<compile_context>
chip_gen: v7x
topology: tpu7x:2x2x1
jax: 0.10.0
libtpu: 0.0.40
codegen_flags: <defaults>
</compile_context>

<pallas_src>
import jax
import jax.numpy as jnp
from jax.experimental import pallas as pl
from jax.experimental.pallas import tpu as pltpu


def _round_up(x, m):
    return ((x + m - 1) // m) * m


# ---------------------------------------------------------------------------
# Kernel A: folded-tap conv (single MXU dot) + bias + BN partial statistics
#           + pre-BN 2x2 max/min pooling, emitted channel-major.
# ---------------------------------------------------------------------------
def _make_conv_pool_kernel(H, W, KH, KW, Cin, C8, pool):
    HW = H * W
    Ho, Wo = H // pool, W // pool
    HoWo = Ho * Wo
    inv_hw = 1.0 / float(HW)

    def kernel(xp_ref, w_ref, b_ref,
               ymax_ref, ymin_ref, mean_ref, ssq_ref,
               y_sc, hmax_sc, hmin_sc):
        # xp_ref : (Hp, Wp, Cin) f32       padded image (batch dim squeezed)
        # w_ref  : (KH*KW*Cin, Cp) bf16    folded weights, (kh, kw, cin) major->minor
        # b_ref  : (1, Cp) f32
        # ymax_ref, ymin_ref : (C8, Ho*Wo) f32   channel-major pooled conv output
        # mean_ref, ssq_ref  : (1, Cp) f32       per-image BN partial statistics
        # y_sc : (H, W, Cp) f32 ; hmax_sc / hmin_sc : (H, Wo, Cp) f32
        cp = w_ref.shape[-1]

        # -- folded im2col row block built in VMEM (lane-dim concat, no HBM im2col) --
        patches = []
        for kh in range(KH):                       # static unroll over taps
            for kw in range(KW):
                patches.append(xp_ref[kh:kh + H, kw:kw + W, :].reshape(HW, Cin))
        lhs = jnp.concatenate(patches, axis=1).astype(jnp.bfloat16)   # (HW, KH*KW*Cin)

        # -- single MXU matmul, K = KH*KW*Cin, f32 accumulation + bias --
        y = jnp.dot(lhs, w_ref[...], preferred_element_type=jnp.float32) + b_ref[...]

        # -- BatchNorm partial statistics (centered per image; combined in glue) --
        m = jnp.sum(y, axis=0, keepdims=True) * inv_hw                # (1, Cp)
        d = y - m
        mean_ref[...] = m
        ssq_ref[...] = jnp.sum(d * d, axis=0, keepdims=True)

        # -- pre-BN 2x2 max/min pooling (floor semantics, handles ragged H/W) --
        y_sc[...] = y.reshape(H, W, cp)
        a = y_sc[:, pl.ds(0, Wo, 2), :]                               # (H, Wo, Cp)
        b = y_sc[:, pl.ds(1, Wo, 2), :]
        hmax_sc[...] = jnp.maximum(a, b)
        hmin_sc[...] = jnp.minimum(a, b)
        pmax = jnp.maximum(hmax_sc[pl.ds(0, Ho, 2), :, :],
                           hmax_sc[pl.ds(1, Ho, 2), :, :]).reshape(HoWo, cp)
        pmin = jnp.minimum(hmin_sc[pl.ds(0, Ho, 2), :, :],
                           hmin_sc[pl.ds(1, Ho, 2), :, :]).reshape(HoWo, cp)

        # -- channel-major outputs: (Ho*Wo, Cp) -> (C8, Ho*Wo); drops lane padding --
        ymax_ref[...] = jnp.transpose(pmax)[:C8, :]
        ymin_ref[...] = jnp.transpose(pmin)[:C8, :]

    return kernel


# ---------------------------------------------------------------------------
# Kernel B: BN affine (via max/min select on the scale sign) + ReLU, elementwise.
# ---------------------------------------------------------------------------
def _bn_relu_kernel(xmax_ref, xmin_ref, scale_ref, shift_ref, o_ref):
    # xmax/xmin/o : (C8, Ho*Wo) f32 ; scale/shift : (C8, 1) f32  (all channel-major)
    sc = scale_ref[...]
    # relu(max_i(sc*x_i + sh)) == relu(sc*max(x)+sh) if sc>=0 else relu(sc*min(x)+sh):
    # 1 select + 1 mul + 1 add + 1 max per output element.
    picked = jnp.where(sc >= 0.0, xmax_ref[...], xmin_ref[...])
    o_ref[...] = jnp.maximum(picked * sc + shift_ref[...], 0.0)


# ---------------------------------------------------------------------------
# Wrapper: conv_block.forward  (Conv2d 'same' -> BatchNorm2d(train) -> ReLU -> MaxPool)
# ---------------------------------------------------------------------------
def conv_block_forward(x_nchw, w_oihw, bias, gamma, beta, *, pool_size=2, eps=1e-5):
    # TODO(synk): dropout branch of the module is only active when dropout != False
    # (default constructor has no dropout); not implemented here.
    x_nchw = x_nchw.astype(jnp.float32)
    N, Cin, H, W = x_nchw.shape
    Cout, _, KH, KW = w_oihw.shape
    p = pool_size
    Cp = _round_up(Cout, 128)     # lane-dense channel count for MXU / BN-stat math
    C8 = _round_up(Cout, 8)       # sublane-dense channel count for the intermediates
    HW = H * W
    Ho, Wo = H // p, W // p
    HoWo = Ho * Wo
    Kf = KH * KW * Cin

    # ---- glue: 'same' padding (stride 1; PyTorch pads extra on bottom/right for even k)
    pt, pb = (KH - 1) // 2, (KH - 1) - (KH - 1) // 2
    pli, pri = (KW - 1) // 2, (KW - 1) - (KW - 1) // 2
    # TODO(synk): NHWC transpose + padding could be folded into kernel A with halo
    # index maps; the input is the smallest tensor here so it stays in glue.
    x = jnp.transpose(x_nchw, (0, 2, 3, 1))                              # NHWC f32
    xp = jnp.pad(x, ((0, 0), (pt, pb), (pli, pri), (0, 0)))
    Hp, Wp = H + KH - 1, W + KW - 1

    # weights OIHW -> folded (KH*KW*Cin, Cp) bf16; bias/gamma/beta padded to Cp (f32)
    wt = jnp.transpose(w_oihw, (2, 3, 1, 0)).reshape(Kf, Cout)
    wt = jnp.pad(wt, ((0, 0), (0, Cp - Cout))).astype(jnp.bfloat16)
    bp = jnp.pad(bias.astype(jnp.float32), (0, Cp - Cout)).reshape(1, Cp)

    # ---- Kernel A -------------------------------------------------------------
    flops_a = 2 * N * HW * Kf * Cp + 10 * N * HW * Cp
    bytes_a = (xp.size * 4 + wt.size * 2 + bp.size * 4
               + 2 * N * C8 * HoWo * 4 + 2 * N * Cp * 4)
    ymax, ymin, mean_img, ssq_img = pl.pallas_call(
        _make_conv_pool_kernel(H, W, KH, KW, Cin, C8, p),
        out_shape=(jax.ShapeDtypeStruct((N, C8, HoWo), jnp.float32),
                   jax.ShapeDtypeStruct((N, C8, HoWo), jnp.float32),
                   jax.ShapeDtypeStruct((N, 1, Cp), jnp.float32),
                   jax.ShapeDtypeStruct((N, 1, Cp), jnp.float32)),
        grid=(N,),
        in_specs=[pl.BlockSpec((None, Hp, Wp, Cin), lambda n: (n, 0, 0, 0)),
                  pl.BlockSpec((Kf, Cp), lambda n: (0, 0)),
                  pl.BlockSpec((1, Cp), lambda n: (0, 0))],
        out_specs=(pl.BlockSpec((None, C8, HoWo), lambda n: (n, 0, 0)),
                   pl.BlockSpec((None, C8, HoWo), lambda n: (n, 0, 0)),
                   pl.BlockSpec((None, 1, Cp), lambda n: (n, 0, 0)),
                   pl.BlockSpec((None, 1, Cp), lambda n: (n, 0, 0))),
        scratch_shapes=[pltpu.VMEM((H, W, Cp), jnp.float32),
                        pltpu.VMEM((H, Wo, Cp), jnp.float32),
                        pltpu.VMEM((H, Wo, Cp), jnp.float32)],
        compiler_params=pltpu.CompilerParams(
            dimension_semantics=("parallel",),
            vmem_limit_bytes=32 * 1024 * 1024),     # re-checked vs v7x's 64 MiB VMEM
        cost_estimate=pl.CostEstimate(flops=flops_a, transcendentals=0,
                                      bytes_accessed=bytes_a),
    )(xp, wt, bp)

    # ---- glue: BN batch stats (parallel-variance combine of centered partials) -----
    mean = jnp.mean(mean_img, axis=0)                                   # (1, Cp)
    var = (jnp.sum(ssq_img, axis=0)
           + HW * jnp.sum((mean_img - mean) ** 2, axis=0)) / (N * HW)   # biased var
    var = jnp.maximum(var, 0.0)
    gamma_p = jnp.pad(gamma.astype(jnp.float32), (0, Cp - Cout)).reshape(1, Cp)
    beta_p = jnp.pad(beta.astype(jnp.float32), (0, Cp - Cout)).reshape(1, Cp)
    scale = gamma_p * jax.lax.rsqrt(var + eps)                          # (1, Cp)
    shift = beta_p - mean * scale
    scale_cm = jnp.pad(scale[0, :Cout], (0, C8 - Cout)).reshape(C8, 1)  # channel-major
    shift_cm = jnp.pad(shift[0, :Cout], (0, C8 - Cout)).reshape(C8, 1)

    # ---- Kernel B: BN select + ReLU on the pooled max/min (dense blocks only) ------
    flops_b = 4 * N * C8 * HoWo
    bytes_b = 3 * N * C8 * HoWo * 4 + 2 * C8 * 4
    out = pl.pallas_call(
        _bn_relu_kernel,
        out_shape=jax.ShapeDtypeStruct((N, C8, HoWo), jnp.float32),
        grid=(N,),
        in_specs=[pl.BlockSpec((None, C8, HoWo), lambda n: (n, 0, 0)),
                  pl.BlockSpec((None, C8, HoWo), lambda n: (n, 0, 0)),
                  pl.BlockSpec((C8, 1), lambda n: (0, 0)),
                  pl.BlockSpec((C8, 1), lambda n: (0, 0))],
        out_specs=pl.BlockSpec((None, C8, HoWo), lambda n: (n, 0, 0)),
        compiler_params=pltpu.CompilerParams(
            dimension_semantics=("parallel",),
            vmem_limit_bytes=32 * 1024 * 1024),
        cost_estimate=pl.CostEstimate(flops=flops_b, transcendentals=0,
                                      bytes_accessed=bytes_b),
    )(ymax, ymin, scale_cm, shift_cm)

    # ---- glue: already channel-major -> drop C8 padding, reshape to NCHW -----------
    return out[:, :Cout, :].reshape(N, Cout, Ho, Wo)


# ---------------------------------------------------------------------------
# Pure-JAX reference (for correctness check)
# ---------------------------------------------------------------------------
def _reference(x, w, b, gamma, beta, pool_size=2, eps=1e-5, conv_dtype=jnp.float32):
    y = jax.lax.conv_general_dilated(
        x.astype(conv_dtype), w.astype(conv_dtype), window_strides=(1, 1),
        padding='SAME', dimension_numbers=('NCHW', 'OIHW', 'NCHW'),
        preferred_element_type=jnp.float32)
    y = y + b.reshape(1, -1, 1, 1)
    mean = y.mean(axis=(0, 2, 3), keepdims=True)
    var = ((y - mean) ** 2).mean(axis=(0, 2, 3), keepdims=True)
    y = (y - mean) * jax.lax.rsqrt(var + eps)
    y = y * gamma.reshape(1, -1, 1, 1) + beta.reshape(1, -1, 1, 1)
    y = jnp.maximum(y, 0.0)
    N, C, H, W = y.shape
    Ho, Wo = H // pool_size, W // pool_size
    y = y[:, :, :Ho * pool_size, :Wo * pool_size]
    y = y.reshape(N, C, Ho, pool_size, Wo, pool_size).max(axis=(3, 5))
    return y


if __name__ == "__main__":
    key = jax.random.PRNGKey(0)
    kx, kw, kb, kg, kbe = jax.random.split(key, 5)

    # conv_block(in_channels=4, out_channels=8, kernel_size=3, pool_size=2)
    N, Cin, H, W = 2, 4, 16, 16
    Cout, KH, KW = 8, 3, 3

    x = jax.random.normal(kx, (N, Cin, H, W), jnp.float32)
    w = 0.1 * jax.random.normal(kw, (Cout, Cin, KH, KW), jnp.float32)   # PyTorch OIHW
    b = 0.1 * jax.random.normal(kb, (Cout,), jnp.float32)
    gamma = 1.0 + 0.1 * jax.random.normal(kg, (Cout,), jnp.float32)
    beta = 0.1 * jax.random.normal(kbe, (Cout,), jnp.float32)

    out = jax.jit(conv_block_forward)(x, w, b, gamma, beta)
    out = jax.block_until_ready(out)
    assert out.shape == (N, Cout, H // 2, W // 2), out.shape

    # Tight check vs. a reference whose conv also uses bf16 operands (same MXU path).
    ref_bf16 = _reference(x, w, b, gamma, beta, conv_dtype=jnp.bfloat16)
    err16 = float(jnp.max(jnp.abs(out - ref_bf16)))
    assert jnp.allclose(out, ref_bf16, atol=2e-3, rtol=2e-3), \
        f"max abs err vs bf16-conv reference = {err16}"

    # Loose sanity check vs. full-f32 reference (bound set by bf16 MXU input quantization).
    ref_f32 = _reference(x, w, b, gamma, beta, conv_dtype=jnp.float32)
    err32 = float(jnp.max(jnp.abs(out - ref_f32)))
    assert jnp.allclose(out, ref_f32, atol=5e-2, rtol=5e-2), \
        f"max abs err vs f32 reference = {err32}"

    print("KERNEL_OK")
</pallas_src>

<mosaic_0001>
module attributes {stable_mosaic.version = 11 : i64} {
  func.func @kernel(%arg0: i32, %arg1: memref<1x18x18x4xf32, #tpu.memory_space<vmem>>, %arg2: memref<36x128xbf16, #tpu.memory_space<vmem>>, %arg3: memref<1x128xf32, #tpu.memory_space<vmem>>, %arg4: memref<1x8x64xf32, #tpu.memory_space<vmem>>, %arg5: memref<1x8x64xf32, #tpu.memory_space<vmem>>, %arg6: memref<1x1x128xf32, #tpu.memory_space<vmem>>, %arg7: memref<1x1x128xf32, #tpu.memory_space<vmem>>, %arg8: memref<16x16x128xf32, #tpu.memory_space<vmem>>, %arg9: memref<16x8x128xf32, #tpu.memory_space<vmem>>, %arg10: memref<16x8x128xf32, #tpu.memory_space<vmem>>) attributes {dimension_semantics = [#tpu.dimension_semantics<parallel>], iteration_bounds = array<i64: 2>, scalar_prefetch = 0 : i64, scratch_operands = 3 : i64, tpu.core_type = #tpu.core_type<tc>, window_params = [{transform_indices = @transform_0, window_bounds = array<i64: 1, 18, 18, 4>}, {pipeline_mode = #tpu.pipeline_mode<synchronous>, transform_indices = @transform_1, window_bounds = array<i64: 36, 128>}, {pipeline_mode = #tpu.pipeline_mode<synchronous>, transform_indices = @transform_2, window_bounds = array<i64: 1, 128>}, {transform_indices = @transform_3, window_bounds = array<i64: 1, 8, 64>}, {transform_indices = @transform_4, window_bounds = array<i64: 1, 8, 64>}, {transform_indices = @transform_5, window_bounds = array<i64: 1, 1, 128>}, {transform_indices = @transform_6, window_bounds = array<i64: 1, 1, 128>}]} {
    %c0 = arith.constant 0 : index
    %c0_0 = arith.constant 0 : index
    %c0_1 = arith.constant 0 : index
    %c0_2 = arith.constant 0 : index
    %0 = vector.load %arg1[%c0, %c0_0, %c0_1, %c0_2] : memref<1x18x18x4xf32, #tpu.memory_space<vmem>>, vector<1x16x16x4xf32>
    %1 = vector.shape_cast %0 : vector<1x16x16x4xf32> to vector<16x16x4xf32>
    %2 = vector.shape_cast %1 : vector<16x16x4xf32> to vector<256x4xf32>
    %c0_3 = arith.constant 0 : index
    %c0_4 = arith.constant 0 : index
    %c1 = arith.constant 1 : index
    %c0_5 = arith.constant 0 : index
    %3 = vector.load %arg1[%c0_3, %c0_4, %c1, %c0_5] : memref<1x18x18x4xf32, #tpu.memory_space<vmem>>, vector<1x16x16x4xf32>
    %4 = vector.shape_cast %3 : vector<1x16x16x4xf32> to vector<16x16x4xf32>
    %5 = vector.shape_cast %4 : vector<16x16x4xf32> to vector<256x4xf32>
    %c0_6 = arith.constant 0 : index
    %c0_7 = arith.constant 0 : index
    %c2 = arith.constant 2 : index
    %c0_8 = arith.constant 0 : index
    %6 = vector.load %arg1[%c0_6, %c0_7, %c2, %c0_8] : memref<1x18x18x4xf32, #tpu.memory_space<vmem>>, vector<1x16x16x4xf32>
    %7 = vector.shape_cast %6 : vector<1x16x16x4xf32> to vector<16x16x4xf32>
    %8 = vector.shape_cast %7 : vector<16x16x4xf32> to vector<256x4xf32>
    %c0_9 = arith.constant 0 : index
    %c1_10 = arith.constant 1 : index
    %c0_11 = arith.constant 0 : index
    %c0_12 = arith.constant 0 : index
    %9 = vector.load %arg1[%c0_9, %c1_10, %c0_11, %c0_12] : memref<1x18x18x4xf32, #tpu.memory_space<vmem>>, vector<1x16x16x4xf32>
    %10 = vector.shape_cast %9 : vector<1x16x16x4xf32> to vector<16x16x4xf32>
    %11 = vector.shape_cast %10 : vector<16x16x4xf32> to vector<256x4xf32>
    %c0_13 = arith.constant 0 : index
    %c1_14 = arith.constant 1 : index
    %c1_15 = arith.constant 1 : index
    %c0_16 = arith.constant 0 : index
    %12 = vector.load %arg1[%c0_13, %c1_14, %c1_15, %c0_16] : memref<1x18x18x4xf32, #tpu.memory_space<vmem>>, vector<1x16x16x4xf32>
    %13 = vector.shape_cast %12 : vector<1x16x16x4xf32> to vector<16x16x4xf32>
    %14 = vector.shape_cast %13 : vector<16x16x4xf32> to vector<256x4xf32>
    %c0_17 = arith.constant 0 : index
    %c1_18 = arith.constant 1 : index
    %c2_19 = arith.constant 2 : index
    %c0_20 = arith.constant 0 : index
    %15 = vector.load %arg1[%c0_17, %c1_18, %c2_19, %c0_20] : memref<1x18x18x4xf32, #tpu.memory_space<vmem>>, vector<1x16x16x4xf32>
    %16 = vector.shape_cast %15 : vector<1x16x16x4xf32> to vector<16x16x4xf32>
    %17 = vector.shape_cast %16 : vector<16x16x4xf32> to vector<256x4xf32>
    %c0_21 = arith.constant 0 : index
    %c2_22 = arith.constant 2 : index
    %c0_23 = arith.constant 0 : index
    %c0_24 = arith.constant 0 : index
    %18 = vector.load %arg1[%c0_21, %c2_22, %c0_23, %c0_24] : memref<1x18x18x4xf32, #tpu.memory_space<vmem>>, vector<1x16x16x4xf32>
    %19 = vector.shape_cast %18 : vector<1x16x16x4xf32> to vector<16x16x4xf32>
    %20 = vector.shape_cast %19 : vector<16x16x4xf32> to vector<256x4xf32>
    %c0_25 = arith.constant 0 : index
    %c2_26 = arith.constant 2 : index
    %c1_27 = arith.constant 1 : index
    %c0_28 = arith.constant 0 : index
    %21 = vector.load %arg1[%c0_25, %c2_26, %c1_27, %c0_28] : memref<1x18x18x4xf32, #tpu.memory_space<vmem>>, vector<1x16x16x4xf32>
    %22 = vector.shape_cast %21 : vector<1x16x16x4xf32> to vector<16x16x4xf32>
    %23 = vector.shape_cast %22 : vector<16x16x4xf32> to vector<256x4xf32>
    %c0_29 = arith.constant 0 : index
    %c2_30 = arith.constant 2 : index
    %c2_31 = arith.constant 2 : index
    %c0_32 = arith.constant 0 : index
    %24 = vector.load %arg1[%c0_29, %c2_30, %c2_31, %c0_32] : memref<1x18x18x4xf32, #tpu.memory_space<vmem>>, vector<1x16x16x4xf32>
    %25 = vector.shape_cast %24 : vector<1x16x16x4xf32> to vector<16x16x4xf32>
    %26 = vector.shape_cast %25 : vector<16x16x4xf32> to vector<256x4xf32>
    %27 = tpu.concatenate %2, %5, %8, %11, %14, %17, %20, %23, %26 in 1 : vector<256x4xf32>, vector<256x4xf32>, vector<256x4xf32>, vector<256x4xf32>, vector<256x4xf32>, vector<256x4xf32>, vector<256x4xf32>, vector<256x4xf32>, vector<256x4xf32> -> vector<256x36xf32>
    %28 = arith.truncf %27 : vector<256x36xf32> to vector<256x36xbf16>
    %c0_33 = arith.constant 0 : index
    %c0_34 = arith.constant 0 : index
    %29 = vector.load %arg2[%c0_33, %c0_34] : memref<36x128xbf16, #tpu.memory_space<vmem>>, vector<36x128xbf16>
    %cst = arith.constant dense<0.000000e+00> : vector<256x128xf32>
    %30 = tpu.matmul %28, %29, %cst {dimension_numbers = #tpu.dot_dimension_numbers<[1], [0], [0], [1], [0, 0, 1, 1], [], []>} : vector<256x36xbf16>, vector<36x128xbf16>, vector<256x128xf32> -> vector<256x128xf32>
    %c0_35 = arith.constant 0 : index
    %c0_36 = arith.constant 0 : index
    %31 = vector.load %arg3[%c0_35, %c0_36] : memref<1x128xf32, #tpu.memory_space<vmem>>, vector<1x128xf32>
    %32 = vector.broadcast %31 : vector<1x128xf32> to vector<256x128xf32>
    %33 = arith.addf %30, %32 : vector<256x128xf32>
    %cst_37 = arith.constant dense<0.000000e+00> : vector<128xf32>
    %34 = vector.multi_reduction <add>, %33, %cst_37 [0] : vector<256x128xf32> to vector<128xf32>
    %35 = vector.shape_cast %34 : vector<128xf32> to vector<1x128xf32>
    %cst_38 = arith.constant 3.906250e-03 : f32
    %36 = vector.broadcast %cst_38 : f32 to vector<1x128xf32>
    %37 = arith.mulf %35, %36 : vector<1x128xf32>
    %38 = vector.broadcast %37 : vector<1x128xf32> to vector<256x128xf32>
    %39 = arith.subf %33, %38 : vector<256x128xf32>
    %c0_39 = arith.constant 0 : index
    %c0_40 = arith.constant 0 : index
    %c0_41 = arith.constant 0 : index
    %40 = vector.load %arg6[%c0_39, %c0_40, %c0_41] : memref<1x1x128xf32, #tpu.memory_space<vmem>>, vector<1x1x128xf32>
    %41 = vector.shape_cast %40 : vector<1x1x128xf32> to vector<1x128xf32>
    %42 = vector.shape_cast %37 : vector<1x128xf32> to vector<1x1x128xf32>
    tpu.vector_store %arg6[%c0_39, %c0_40, %c0_41], %42 {strides = array<i32>} : memref<1x1x128xf32, #tpu.memory_space<vmem>>, vector<1x1x128xf32>,
    %43 = arith.mulf %39, %39 : vector<256x128xf32>
    %cst_42 = arith.constant dense<0.000000e+00> : vector<128xf32>
    %44 = vector.multi_reduction <add>, %43, %cst_42 [0] : vector<256x128xf32> to vector<128xf32>
    %45 = vector.shape_cast %44 : vector<128xf32> to vector<1x128xf32>
    %c0_43 = arith.constant 0 : index
    %c0_44 = arith.constant 0 : index
    %c0_45 = arith.constant 0 : index
    %46 = vector.load %arg7[%c0_43, %c0_44, %c0_45] : memref<1x1x128xf32, #tpu.memory_space<vmem>>, vector<1x1x128xf32>
    %47 = vector.shape_cast %46 : vector<1x1x128xf32> to vector<1x128xf32>
    %48 = vector.shape_cast %45 : vector<1x128xf32> to vector<1x1x128xf32>
    tpu.vector_store %arg7[%c0_43, %c0_44, %c0_45], %48 {strides = array<i32>} : memref<1x1x128xf32, #tpu.memory_space<vmem>>, vector<1x1x128xf32>,
    %49 = vector.shape_cast %33 : vector<256x128xf32> to vector<16x16x128xf32>
    %c0_46 = arith.constant 0 : index
    %c0_47 = arith.constant 0 : index
    %c0_48 = arith.constant 0 : index
    %50 = vector.load %arg8[%c0_46, %c0_47, %c0_48] : memref<16x16x128xf32, #tpu.memory_space<vmem>>, vector<16x16x128xf32>
    tpu.vector_store %arg8[%c0_46, %c0_47, %c0_48], %49 {strides = array<i32>} : memref<16x16x128xf32, #tpu.memory_space<vmem>>, vector<16x16x128xf32>,
    %c0_49 = arith.constant 0 : index
    %c0_50 = arith.constant 0 : index
    %c0_51 = arith.constant 0 : index
    %51 = tpu.strided_load %arg8[%c0_49, %c0_50, %c0_51] {strides = array<i32: 1, 2, 1>} : memref<16x16x128xf32, #tpu.memory_space<vmem>>, vector<16x8x128xf32>
    %c0_52 = arith.constant 0 : index
    %c1_53 = arith.constant 1 : index
    %c0_54 = arith.constant 0 : index
    %52 = tpu.strided_load %arg8[%c0_52, %c1_53, %c0_54] {strides = array<i32: 1, 2, 1>} : memref<16x16x128xf32, #tpu.memory_space<vmem>>, vector<16x8x128xf32>
    %53 = arith.maximumf %51, %52 : vector<16x8x128xf32>
    %c0_55 = arith.constant 0 : index
    %c0_56 = arith.constant 0 : index
    %c0_57 = arith.constant 0 : index
    %54 = vector.load %arg9[%c0_55, %c0_56, %c0_57] : memref<16x8x128xf32, #tpu.memory_space<vmem>>, vector<16x8x128xf32>
    tpu.vector_store %arg9[%c0_55, %c0_56, %c0_57], %53 {strides = array<i32>} : memref<16x8x128xf32, #tpu.memory_space<vmem>>, vector<16x8x128xf32>,
    %55 = arith.minimumf %51, %52 : vector<16x8x128xf32>
    %c0_58 = arith.constant 0 : index
    %c0_59 = arith.constant 0 : index
    %c0_60 = arith.constant 0 : index
    %56 = vector.load %arg10[%c0_58, %c0_59, %c0_60] : memref<16x8x128xf32, #tpu.memory_space<vmem>>, vector<16x8x128xf32>
    tpu.vector_store %arg10[%c0_58, %c0_59, %c0_60], %55 {strides = array<i32>} : memref<16x8x128xf32, #tpu.memory_space<vmem>>, vector<16x8x128xf32>,
    %c0_61 = arith.constant 0 : index
    %c0_62 = arith.constant 0 : index
    %c0_63 = arith.constant 0 : index
    %57 = tpu.strided_load %arg9[%c0_61, %c0_62, %c0_63] {strides = array<i32: 2, 1, 1>} : memref<16x8x128xf32, #tpu.memory_space<vmem>>, vector<8x8x128xf32>
    %c1_64 = arith.constant 1 : index
    %c0_65 = arith.constant 0 : index
    %c0_66 = arith.constant 0 : index
    %58 = tpu.strided_load %arg9[%c1_64, %c0_65, %c0_66] {strides = array<i32: 2, 1, 1>} : memref<16x8x128xf32, #tpu.memory_space<vmem>>, vector<8x8x128xf32>
    %59 = arith.maximumf %57, %58 : vector<8x8x128xf32>
    %60 = vector.shape_cast %59 : vector<8x8x128xf32> to vector<64x128xf32>
    %c0_67 = arith.constant 0 : index
    %c0_68 = arith.constant 0 : index
    %c0_69 = arith.constant 0 : index
    %61 = tpu.strided_load %arg10[%c0_67, %c0_68, %c0_69] {strides = array<i32: 2, 1, 1>} : memref<16x8x128xf32, #tpu.memory_space<vmem>>, vector<8x8x128xf32>
    %c1_70 = arith.constant 1 : index
    %c0_71 = arith.constant 0 : index
    %c0_72 = arith.constant 0 : index
    %62 = tpu.strided_load %arg10[%c1_70, %c0_71, %c0_72] {strides = array<i32: 2, 1, 1>} : memref<16x8x128xf32, #tpu.memory_space<vmem>>, vector<8x8x128xf32>
    %63 = arith.minimumf %61, %62 : vector<8x8x128xf32>
    %64 = vector.shape_cast %63 : vector<8x8x128xf32> to vector<64x128xf32>
    %65 = tpu.transpose %60, [1, 0] : vector<64x128xf32> -> vector<128x64xf32>
    %66 = vector.extract_strided_slice %65 {offsets = [0, 0], sizes = [8, 64], strides = [1, 1]} : vector<128x64xf32> to vector<8x64xf32>
    %c0_73 = arith.constant 0 : index
    %c0_74 = arith.constant 0 : index
    %c0_75 = arith.constant 0 : index
    %67 = vector.load %arg4[%c0_73, %c0_74, %c0_75] : memref<1x8x64xf32, #tpu.memory_space<vmem>>, vector<1x8x64xf32>
    %68 = vector.shape_cast %67 : vector<1x8x64xf32> to vector<8x64xf32>
    %69 = vector.shape_cast %66 : vector<8x64xf32> to vector<1x8x64xf32>
    tpu.vector_store %arg4[%c0_73, %c0_74, %c0_75], %69 {strides = array<i32>} : memref<1x8x64xf32, #tpu.memory_space<vmem>>, vector<1x8x64xf32>,
    %70 = tpu.transpose %64, [1, 0] : vector<64x128xf32> -> vector<128x64xf32>
    %71 = vector.extract_strided_slice %70 {offsets = [0, 0], sizes = [8, 64], strides = [1, 1]} : vector<128x64xf32> to vector<8x64xf32>
    %c0_76 = arith.constant 0 : index
    %c0_77 = arith.constant 0 : index
    %c0_78 = arith.constant 0 : index
    %72 = vector.load %arg5[%c0_76, %c0_77, %c0_78] : memref<1x8x64xf32, #tpu.memory_space<vmem>>, vector<1x8x64xf32>
    %73 = vector.shape_cast %72 : vector<1x8x64xf32> to vector<8x64xf32>
    %74 = vector.shape_cast %71 : vector<8x64xf32> to vector<1x8x64xf32>
    tpu.vector_store %arg5[%c0_76, %c0_77, %c0_78], %74 {strides = array<i32>} : memref<1x8x64xf32, #tpu.memory_space<vmem>>, vector<1x8x64xf32>,
    return
  }
  func.func @transform_0(%arg0: i32) -> (i32, i32, i32, i32) {
    %c0_i32 = arith.constant 0 : i32
    %c0_i32_0 = arith.constant 0 : i32
    %c0_i32_1 = arith.constant 0 : i32
    %c0_i32_2 = arith.constant 0 : i32
    return %arg0, %c0_i32, %c0_i32_0, %c0_i32_1 : i32, i32, i32, i32
  }
  func.func @transform_1(%arg0: i32) -> (i32, i32) {
    %c0_i32 = arith.constant 0 : i32
    %c0_i32_0 = arith.constant 0 : i32
    %c0_i32_1 = arith.constant 0 : i32
    return %c0_i32, %c0_i32_0 : i32, i32
  }
  func.func @transform_2(%arg0: i32) -> (i32, i32) {
    %c0_i32 = arith.constant 0 : i32
    %c0_i32_0 = arith.constant 0 : i32
    %c0_i32_1 = arith.constant 0 : i32
    return %c0_i32, %c0_i32_0 : i32, i32
  }
  func.func @transform_3(%arg0: i32) -> (i32, i32, i32) {
    %c0_i32 = arith.constant 0 : i32
    %c0_i32_0 = arith.constant 0 : i32
    %c0_i32_1 = arith.constant 0 : i32
    return %arg0, %c0_i32, %c0_i32_0 : i32, i32, i32
  }
  func.func @transform_4(%arg0: i32) -> (i32, i32, i32) {
    %c0_i32 = arith.constant 0 : i32
    %c0_i32_0 = arith.constant 0 : i32
    %c0_i32_1 = arith.constant 0 : i32
    return %arg0, %c0_i32, %c0_i32_0 : i32, i32, i32
  }
  func.func @transform_5(%arg0: i32) -> (i32, i32, i32) {
    %c0_i32 = arith.constant 0 : i32
    %c0_i32_0 = arith.constant 0 : i32
    %c0_i32_1 = arith.constant 0 : i32
    return %arg0, %c0_i32, %c0_i32_0 : i32, i32, i32
  }
  func.func @transform_6(%arg0: i32) -> (i32, i32, i32) {
    %c0_i32 = arith.constant 0 : i32
    %c0_i32_0 = arith.constant 0 : i32
    %c0_i32_1 = arith.constant 0 : i32
    return %arg0, %c0_i32, %c0_i32_0 : i32, i32, i32
  }
}

module attributes {stable_mosaic.version = 11 : i64} {
  func.func @_bn_relu_kernel(%arg0: i32, %arg1: memref<1x8x64xf32, #tpu.memory_space<vmem>>, %arg2: memref<1x8x64xf32, #tpu.memory_space<vmem>>, %arg3: memref<8x1xf32, #tpu.memory_space<vmem>>, %arg4: memref<8x1xf32, #tpu.memory_space<vmem>>, %arg5: memref<1x8x64xf32, #tpu.memory_space<vmem>>) attributes {dimension_semantics = [#tpu.dimension_semantics<parallel>], iteration_bounds = array<i64: 2>, scalar_prefetch = 0 : i64, scratch_operands = 0 : i64, tpu.core_type = #tpu.core_type<tc>, window_params = [{transform_indices = @transform_0, window_bounds = array<i64: 1, 8, 64>}, {transform_indices = @transform_1, window_bounds = array<i64: 1, 8, 64>}, {pipeline_mode = #tpu.pipeline_mode<synchronous>, transform_indices = @transform_2, window_bounds = array<i64: 8, 1>}, {pipeline_mode = #tpu.pipeline_mode<synchronous>, transform_indices = @transform_3, window_bounds = array<i64: 8, 1>}, {transform_indices = @transform_4, window_bounds = array<i64: 1, 8, 64>}]} {
    %c0 = arith.constant 0 : index
    %c0_0 = arith.constant 0 : index
    %0 = vector.load %arg3[%c0, %c0_0] : memref<8x1xf32, #tpu.memory_space<vmem>>, vector<8x1xf32>
    %cst = arith.constant 0.000000e+00 : f32
    %1 = vector.broadcast %cst : f32 to vector<8x1xf32>
    %2 = arith.cmpf oge, %0, %1 : vector<8x1xf32>
    %c0_1 = arith.constant 0 : index
    %c0_2 = arith.constant 0 : index
    %c0_3 = arith.constant 0 : index
    %3 = vector.load %arg1[%c0_1, %c0_2, %c0_3] : memref<1x8x64xf32, #tpu.memory_space<vmem>>, vector<1x8x64xf32>
    %4 = vector.shape_cast %3 : vector<1x8x64xf32> to vector<8x64xf32>
    %c0_4 = arith.constant 0 : index
    %c0_5 = arith.constant 0 : index
    %c0_6 = arith.constant 0 : index
    %5 = vector.load %arg2[%c0_4, %c0_5, %c0_6] : memref<1x8x64xf32, #tpu.memory_space<vmem>>, vector<1x8x64xf32>
    %6 = vector.shape_cast %5 : vector<1x8x64xf32> to vector<8x64xf32>
    %7 = vector.shape_cast %2 : vector<8x1xi1> to vector<8x1xi1>
    %8 = vector.broadcast %7 : vector<8x1xi1> to vector<8x64xi1>
    %9 = arith.select %8, %4, %6 : vector<8x64xi1>, vector<8x64xf32>
    %10 = vector.broadcast %0 : vector<8x1xf32> to vector<8x64xf32>
    %11 = arith.mulf %9, %10 : vector<8x64xf32>
    %c0_7 = arith.constant 0 : index
    %c0_8 = arith.constant 0 : index
    %12 = vector.load %arg4[%c0_7, %c0_8] : memref<8x1xf32, #tpu.memory_space<vmem>>, vector<8x1xf32>
    %13 = vector.broadcast %12 : vector<8x1xf32> to vector<8x64xf32>
    %14 = arith.addf %11, %13 : vector<8x64xf32>
    %cst_9 = arith.constant 0.000000e+00 : f32
    %15 = vector.broadcast %cst_9 : f32 to vector<8x64xf32>
    %16 = arith.maximumf %14, %15 : vector<8x64xf32>
    %c0_10 = arith.constant 0 : index
    %c0_11 = arith.constant 0 : index
    %c0_12 = arith.constant 0 : index
    %17 = vector.load %arg5[%c0_10, %c0_11, %c0_12] : memref<1x8x64xf32, #tpu.memory_space<vmem>>, vector<1x8x64xf32>
    %18 = vector.shape_cast %17 : vector<1x8x64xf32> to vector<8x64xf32>
    %19 = vector.shape_cast %16 : vector<8x64xf32> to vector<1x8x64xf32>
    tpu.vector_store %arg5[%c0_10, %c0_11, %c0_12], %19 {strides = array<i32>} : memref<1x8x64xf32, #tpu.memory_space<vmem>>, vector<1x8x64xf32>,
    return
  }
  func.func @transform_0(%arg0: i32) -> (i32, i32, i32) {
    %c0_i32 = arith.constant 0 : i32
    %c0_i32_0 = arith.constant 0 : i32
    %c0_i32_1 = arith.constant 0 : i32
    return %arg0, %c0_i32, %c0_i32_0 : i32, i32, i32
  }
  func.func @transform_1(%arg0: i32) -> (i32, i32, i32) {
    %c0_i32 = arith.constant 0 : i32
    %c0_i32_0 = arith.constant 0 : i32
    %c0_i32_1 = arith.constant 0 : i32
    return %arg0, %c0_i32, %c0_i32_0 : i32, i32, i32
  }
  func.func @transform_2(%arg0: i32) -> (i32, i32) {
    %c0_i32 = arith.constant 0 : i32
    %c0_i32_0 = arith.constant 0 : i32
    %c0_i32_1 = arith.constant 0 : i32
    return %c0_i32, %c0_i32_0 : i32, i32
  }
  func.func @transform_3(%arg0: i32) -> (i32, i32) {
    %c0_i32 = arith.constant 0 : i32
    %c0_i32_0 = arith.constant 0 : i32
    %c0_i32_1 = arith.constant 0 : i32
    return %c0_i32, %c0_i32_0 : i32, i32
  }
  func.func @transform_4(%arg0: i32) -> (i32, i32, i32) {
    %c0_i32 = arith.constant 0 : i32
    %c0_i32_0 = arith.constant 0 : i32
    %c0_i32_1 = arith.constant 0 : i32
    return %arg0, %c0_i32, %c0_i32_0 : i32, i32, i32
  }
}

</mosaic_0001>

<llo_original>
// kernel: conv_block_forward.3
$region0: #{conv_block_forward.3}
  #allocation0 [shape = 'u32[]', space=smem, size = 0x4, offset = 0x4, fixed_abs, tag = 'smem constant byte address 0x4 - core index']
  #allocation1 [shape = 'u32[144,128]{1,0:T(1,128)}', space=vmem, size = 0x12000, scoped, tag = 'internal scratch']
  %s0 = inlined_call_operand.vmem [shape: f32[2,8,64], index: 0, kind: input, shape index: {}]
  %s1 = inlined_call_operand.vmem [shape: f32[2,8,64], index: 1, kind: input, shape index: {}]
  %s2 = inlined_call_operand.vmem [shape: f32[8,1], index: 2, kind: input, shape index: {}]
  %s3 = inlined_call_operand.vmem [shape: f32[8,1], index: 3, kind: input, shape index: {}]
  %s4 = inlined_call_operand.vmem [shape: f32[2,8,64], index: 4, kind: output, shape index: {}]
  %s5 = sld [smem:[#allocation0]]
  $region49: #{conv_block_forward.3} parent=0
    _
  %s7 = ssub.s32 1, %s5
  %s8 = scalar_select 0, %s7, %s5
  loop: start=0, step=1, limit=4
  $region2: #{conv_block_forward.3} parent=0 // loop_pre_header
    _
  $region3: #{conv_block_forward.3} parent=0 // loop_header
    %s10 = sphi 0, %s14
    %p11 = scmp.ge.s32.totalorder %s10, 4
    %s20 = sphi 0, %s22
    %s23 = sphi 0, %s20
    %s24 = sphi 0, %s23
    %s40 = sphi 0, %s24
    %s46 = sphi 0, %s48
    %s49 = sphi 0, %s46
    %s50 = sphi 0, %s49
    %s66 = sphi 0, %s50
    %s70 = sphi 0, %s70
    %s72 = sphi 0, %s70
    %s73 = sphi 0, %s72
    %s87 = sphi 0, %s73
    %s91 = sphi 0, %s91
    %s93 = sphi 0, %s91
    %s94 = sphi 0, %s93
    %s108 = sphi 0, %s94
    %s114 = sphi 0, %s116
    %s117 = sphi 0, %s114
    %s118 = sphi 0, %s117
    %s134 = sphi 0, %s118
  $region4: #{conv_block_forward.3} parent=0 // loop_header_branch
    %13 = sbr.rel (%p11) target = $region8
  $region5: #{conv_block_forward.3} parent=0 // loop_body
    %s15 = ssub.s32 %s10, 1
    %s16 = ssub.s32 %s10, 2
    %s17 = sadd.s32 %s10, 1
    %s18 = ssub.s32 %s10, %s17
    %p19 = scmp.eq.s32.totalorder %s18, 0
    %s21 = sadd.s32 %s20, 1
    %s22 = scalar_select %p19, %s20, %s21
    %p25 = pneg %p19
    %p26 = scmp.eq.s32.totalorder %s10, 1
    %p27 = por %p25, %p26
    %p28 = scmp.ne.s32.totalorder %s20, %s23
    %p29 = scmp.eq.s32.totalorder %s10, 0
    %p30 = por %p28, %p29
    %p31 = scmp.ne.s32.totalorder %s20, %s23
    %p32 = scmp.eq.s32.totalorder %s15, 1
    %p33 = por %p31, %p32
    %p34 = scmp.ne.s32.totalorder %s23, %s24
    %p35 = scmp.eq.s32.totalorder %s15, 0
    %p36 = por %p34, %p35
    %p37 = scmp.ne.s32.totalorder %s23, %s24
    %p38 = scmp.eq.s32.totalorder %s16, 1
    %p39 = por %p37, %p38
    %p41 = scmp.ne.s32.totalorder %s24, %s40
    %p42 = scmp.eq.s32.totalorder %s16, 0
    %p43 = por %p41, %p42
    %s44 = ssub.s32 %s10, %s17
    %p45 = scmp.eq.s32.totalorder %s44, 0
    %s47 = sadd.s32 %s46, 1
    %s48 = scalar_select %p45, %s46, %s47
    %p51 = pneg %p45
    %p52 = scmp.eq.s32.totalorder %s10, 1
    %p53 = por %p51, %p52
    %p54 = scmp.ne.s32.totalorder %s46, %s49
    %p55 = scmp.eq.s32.totalorder %s10, 0
    %p56 = por %p54, %p55
    %p57 = scmp.ne.s32.totalorder %s46, %s49
    %p58 = scmp.eq.s32.totalorder %s15, 1
    %p59 = por %p57, %p58
    %p60 = scmp.ne.s32.totalorder %s49, %s50
    %p61 = scmp.eq.s32.totalorder %s15, 0
    %p62 = por %p60, %p61
    %p63 = scmp.ne.s32.totalorder %s49, %s50
    %p64 = scmp.eq.s32.totalorder %s16, 1
    %p65 = por %p63, %p64
    %p67 = scmp.ne.s32.totalorder %s50, %s66
    %p68 = scmp.eq.s32.totalorder %s16, 0
    %p69 = por %p67, %p68
    %s71 = sadd.s32 %s70, 1
    %p74 = scmp.eq.s32.totalorder %s10, 1
    %p75 = scmp.ne.s32.totalorder %s70, %s72
    %p76 = scmp.eq.s32.totalorder %s10, 0
    %p77 = por %p75, %p76
    %p78 = scmp.ne.s32.totalorder %s70, %s72
    %p79 = scmp.eq.s32.totalorder %s15, 1
    %p80 = por %p78, %p79
    %p81 = scmp.ne.s32.totalorder %s72, %s73
    %p82 = scmp.eq.s32.totalorder %s15, 0
    %p83 = por %p81, %p82
    %p84 = scmp.ne.s32.totalorder %s72, %s73
    %p85 = scmp.eq.s32.totalorder %s16, 1
    %p86 = por %p84, %p85
    %p88 = scmp.ne.s32.totalorder %s73, %s87
    %p89 = scmp.eq.s32.totalorder %s16, 0
    %p90 = por %p88, %p89
    %s92 = sadd.s32 %s91, 1
    %p95 = scmp.eq.s32.totalorder %s10, 1
    %p96 = scmp.ne.s32.totalorder %s91, %s93
    %p97 = scmp.eq.s32.totalorder %s10, 0
    %p98 = por %p96, %p97
    %p99 = scmp.ne.s32.totalorder %s91, %s93
    %p100 = scmp.eq.s32.totalorder %s15, 1
    %p101 = por %p99, %p100
    %p102 = scmp.ne.s32.totalorder %s93, %s94
    %p103 = scmp.eq.s32.totalorder %s15, 0
    %p104 = por %p102, %p103
    %p105 = scmp.ne.s32.totalorder %s93, %s94
    %p106 = scmp.eq.s32.totalorder %s16, 1
    %p107 = por %p105, %p106
    %p109 = scmp.ne.s32.totalorder %s94, %s108
    %p110 = scmp.eq.s32.totalorder %s16, 0
    %p111 = por %p109, %p110
    %s112 = ssub.s32 %s10, %s17
    %p113 = scmp.eq.s32.totalorder %s112, 0
    %s115 = sadd.s32 %s114, 1
    %s116 = scalar_select %p113, %s114, %s115
    %p119 = pneg %p113
    %p120 = scmp.eq.s32.totalorder %s10, 1
    %p121 = por %p119, %p120
    %p122 = scmp.ne.s32.totalorder %s114, %s117
    %p123 = scmp.eq.s32.totalorder %s10, 0
    %p124 = por %p122, %p123
    %p125 = scmp.ne.s32.totalorder %s114, %s117
    %p126 = scmp.eq.s32.totalorder %s15, 1
    %p127 = por %p125, %p126
    %p128 = scmp.ne.s32.totalorder %s117, %s118
    %p129 = scmp.eq.s32.totalorder %s15, 0
    %p130 = por %p128, %p129
    %p131 = scmp.ne.s32.totalorder %s117, %s118
    %p132 = scmp.eq.s32.totalorder %s16, 1
    %p133 = por %p131, %p132
    %p135 = scmp.ne.s32.totalorder %s118, %s134
    %p136 = scmp.eq.s32.totalorder %s16, 0
    %p137 = por %p135, %p136
    %p138 = scmp.le.s32.totalorder 1, %s10
    %p139 = scmp.lt.s32.totalorder %s10, 3
    %p140 = pnand %p138, %p139
    %p141 = pneg %p140
    // Predicated region
    $region9: #{conv_block_forward.3} parent=5 // pred_check
      _
    $region10: #{conv_block_forward.3} parent=5 // pred_check_branch
      %143 = sbr.rel (%p140) target = $region12
    $region11: #{conv_block_forward.3} parent=5 // pred_region
      %s144 = ssub.s32 %s10, 1
      // Predicated region
      $region13: #{conv_block_forward.3} parent=11 // pred_check
        %p145 = pneg %p83
      $region14: #{conv_block_forward.3} parent=11 // pred_check_branch
        %147 = sbr.rel (%p145) target = $region16
      $region15: #{conv_block_forward.3} parent=11 // pred_region
        _
      $region16: #{conv_block_forward.3} parent=11 // pred_fallthru
        _
      // Predicated region
      $region17: #{conv_block_forward.3} parent=11 // pred_check
        %p148 = pneg %p104
      $region18: #{conv_block_forward.3} parent=11 // pred_check_branch
        %150 = sbr.rel (%p148) target = $region20
      $region19: #{conv_block_forward.3} parent=11 // pred_region
        _
      $region20: #{conv_block_forward.3} parent=11 // pred_fallthru
        _
    $region12: #{conv_block_forward.3} parent=5 // pred_fallthru
      _
    %p151 = scmp.lt.s32.totalorder %s10, 2
    // Predicated region
    $region21: #{conv_block_forward.3} parent=5 // pred_check
      %p152 = pneg %p151
    $region22: #{conv_block_forward.3} parent=5 // pred_check_branch
      %154 = sbr.rel (%p152) target = $region24
    $region23: #{conv_block_forward.3} parent=5 // pred_region
      // Predicated region
      $region25: #{conv_block_forward.3} parent=23 // pred_check
        %p155 = pneg %p30
      $region26: #{conv_block_forward.3} parent=23 // pred_check_branch
        %157 = sbr.rel (%p155) target = $region28
      $region27: #{conv_block_forward.3} parent=23 // pred_region
        %p158 = scmp.lt.s32.totalorder %s10, 1
        %s159 = scalar_select %p158, %s10, 1
        %s160 = smul.addr %s159, 8
        %s161 = scalar_lea.vmem %s0, %s160
      $region28: #{conv_block_forward.3} parent=23 // pred_fallthru
        _
      // Predicated region
      $region29: #{conv_block_forward.3} parent=23 // pred_check
        %p162 = pneg %p56
      $region30: #{conv_block_forward.3} parent=23 // pred_check_branch
        %164 = sbr.rel (%p162) target = $region32
      $region31: #{conv_block_forward.3} parent=23 // pred_region
        %p165 = scmp.lt.s32.totalorder %s10, 1
        %s166 = scalar_select %p165, %s10, 1
        %s167 = smul.addr %s166, 8
        %s168 = scalar_lea.vmem %s1, %s167
      $region32: #{conv_block_forward.3} parent=23 // pred_fallthru
        _
    $region24: #{conv_block_forward.3} parent=5 // pred_fallthru
      _
    %p169 = scmp.le.s32.totalorder 1, %s10
    %p170 = scmp.lt.s32.totalorder %s10, 3
    %p171 = pnand %p169, %p170
    %p172 = pneg %p171
    // Predicated region
    $region33: #{conv_block_forward.3} parent=5 // pred_check
      _
    $region34: #{conv_block_forward.3} parent=5 // pred_check_branch
      %174 = sbr.rel (%p171) target = $region36
    $region35: #{conv_block_forward.3} parent=5 // pred_region
      %s175 = ssub.s32 %s10, 1
      %p176 = scmp.lt.s32.totalorder %s15, 1
      %s177 = scalar_select %p176, %s15, 1
      %s178 = smul.addr %s177, 8
      %s179 = scalar_lea.vmem %s0, %s178
      %p180 = pneg %p36
      %p181 = pneg %p33
      %p182 = scmp.lt.s32.totalorder %s15, 1
      %s183 = scalar_select %p182, %s15, 1
      %s184 = smul.addr %s183, 8
      %s185 = scalar_lea.vmem %s1, %s184
      %p186 = pneg %p62
      %p187 = pneg %p59
      %p188 = pneg %p83
      %p189 = pneg %p80
      %p190 = pneg %p104
      %p191 = pneg %p101
      %p192 = pneg %p130
      %p193 = pneg %p127
      %p194 = scmp.lt.s32.totalorder %s15, 1
      %s195 = scalar_select %p194, %s15, 1
      %s196 = smul.addr %s195, 8
      %s197 = scalar_lea.vmem %s4, %s196
      %p198 = scmp.lt.s32.totalorder %s15, 1
      %s199 = scalar_select %p198, %s15, 1
      %s200 = smul.addr %s199, 8
      %s201 = scalar_lea.vmem %s0, %s200
      %p202 = scmp.lt.s32.totalorder %s15, 1
      %s203 = scalar_select %p202, %s15, 1
      %s204 = smul.addr %s203, 8
      %s205 = scalar_lea.vmem %s1, %s204
      %p206 = scmp.lt.s32.totalorder %s15, 1
      %s207 = scalar_select %p206, %s15, 1
      %s208 = smul.addr %s207, 8
      %s209 = scalar_lea.vmem %s4, %s208
      %v210 = vld [vmem:[%s2] sm:$0xff]
      %vm211 = vcmp.ge.f32.partialorder %v210, 0.0
      %v212 = vld [vmem:[%s201] sm:$0xff]
      %v213 = vld [vmem:[%s205] sm:$0xff]
      %v214 = vsel %vm211, 1, 0
      %215 = vset.pattern.permute.xlu0 0
      %216 = vperm.xlu0 %215, %v214
      %v217 = vpop.permute.xlu0 %216
      %vm218 = vcmp.eq.s32.totalorder %v217, 1
      %v219 = vsel %vm218, %v212, %v213
      %221 = vset.pattern.permute.xlu0 0
      %222 = vperm.xlu0 %221, %v210
      %v223 = vpop.permute.xlu0 %222
      %v225 = vmul.f32 %v219, %v223
      %v226 = vld [vmem:[%s3] sm:$0xff]
      %228 = vset.pattern.permute.xlu0 0
      %229 = vperm.xlu0 %228, %v226
      %v230 = vpop.permute.xlu0 %229
      %v232 = vadd.f32 %v225, %v230
      %v233 = vmax.f32 %v232, 0.0
      %vm234 = vcmask 523264
      %235 = vst.msk [vmem:[%s209] sm:$0xff] %vm234, %v233
      %p236 = scmp.lt.s32.totalorder %s15, 1
      %s237 = scalar_select %p236, %s15, 1
      %s238 = smul.addr %s237, 8
      %s239 = scalar_lea.vmem %s4, %s238
      // Predicated region
      $region37: #{conv_block_forward.3} parent=35 // pred_check
        %p240 = pneg %p127
      $region38: #{conv_block_forward.3} parent=35 // pred_check_branch
        %242 = sbr.rel (%p240) target = $region40
      $region39: #{conv_block_forward.3} parent=35 // pred_region
        _
      $region40: #{conv_block_forward.3} parent=35 // pred_fallthru
        _
    $region36: #{conv_block_forward.3} parent=5 // pred_fallthru
      _
    %p243 = scmp.le.s32.totalorder 2, %s10
    // Predicated region
    $region41: #{conv_block_forward.3} parent=5 // pred_check
      %p244 = pneg %p243
    $region42: #{conv_block_forward.3} parent=5 // pred_check_branch
      %246 = sbr.rel (%p244) target = $region44
    $region43: #{conv_block_forward.3} parent=5 // pred_region
      %s247 = ssub.s32 %s10, 2
      // Predicated region
      $region45: #{conv_block_forward.3} parent=43 // pred_check
        %p248 = pneg %p133
      $region46: #{conv_block_forward.3} parent=43 // pred_check_branch
        %250 = sbr.rel (%p248) target = $region48
      $region47: #{conv_block_forward.3} parent=43 // pred_region
        %p251 = scmp.lt.s32.totalorder %s16, 1
        %s252 = scalar_select %p251, %s16, 1
        %s253 = smul.addr %s252, 8
        %s254 = scalar_lea.vmem %s4, %s253
      $region48: #{conv_block_forward.3} parent=43 // pred_fallthru
        _
    $region44: #{conv_block_forward.3} parent=5 // pred_fallthru
      _
  $region6: #{conv_block_forward.3} parent=0 // loop_footer
    %s14 = sadd.s32 1, %s10
  $region7: #{conv_block_forward.3} parent=0 // loop_footer_branch
    %9 = sbr.rel target = $region3
  $region8: #{conv_block_forward.3} parent=0 // loop_exit
    _

// kernel: conv_block_forward.2
$region0: #{conv_block_forward.2}
  #allocation0 [shape = 'u32[]', space=smem, size = 0x4, offset = 0x4, fixed_abs, tag = 'smem constant byte address 0x4 - core index']
  #allocation1 [shape = 'u32[144,128]{1,0:T(1,128)}', space=vmem, size = 0x12000, scoped, tag = 'internal scratch']
  #allocation2 [shape = 'f32[16,16,128]{2,1,0:T(8,128)}', space=vmem, size = 0x20000, scoped, tag = 'scratch operand']
  #allocation3 [shape = 'f32[16,8,128]{2,1,0:T(8,128)}', space=vmem, size = 0x10000, scoped, tag = 'scratch operand']
  #allocation4 [shape = 'f32[16,8,128]{2,1,0:T(8,128)}', space=vmem, size = 0x10000, scoped, tag = 'scratch operand']
  %s0 = inlined_call_operand.vmem [shape: f32[2,18,18,4], index: 0, kind: input, shape index: {}]
  %s1 = inlined_call_operand.vmem [shape: bf16[36,128], index: 1, kind: input, shape index: {}]
  %s2 = inlined_call_operand.vmem [shape: f32[1,128], index: 2, kind: input, shape index: {}]
  %s3 = inlined_call_operand.vmem [shape: f32[2,8,64], index: 3, kind: output, shape index: {0}]
  %s4 = inlined_call_operand.vmem [shape: f32[2,8,64], index: 4, kind: output, shape index: {1}]
  %s5 = inlined_call_operand.vmem [shape: f32[2,1,128], index: 5, kind: output, shape index: {2}]
  %s6 = inlined_call_operand.vmem [shape: f32[2,1,128], index: 6, kind: output, shape index: {3}]
  %7 = xla_tuple %s3, %s4, %s5, %s6
  %s8 = sld [smem:[#allocation0]]
  $region69: #{conv_block_forward.2} parent=0
    _
  %s10 = ssub.s32 1, %s8
  %s11 = scalar_select 0, %s10, %s8
  loop: start=0, step=1, limit=4
  $region2: #{conv_block_forward.2} parent=0 // loop_pre_header
    _
  $region3: #{conv_block_forward.2} parent=0 // loop_header
    %s13 = sphi 0, %s17
    %p14 = scmp.ge.s32.totalorder %s13, 4
    %s23 = sphi 0, %s25
    %s26 = sphi 0, %s23
    %s27 = sphi 0, %s26
    %s43 = sphi 0, %s27
    %s47 = sphi 0, %s47
    %s49 = sphi 0, %s47
    %s50 = sphi 0, %s49
    %s64 = sphi 0, %s50
    %s68 = sphi 0, %s68
    %s70 = sphi 0, %s68
    %s71 = sphi 0, %s70
    %s85 = sphi 0, %s71
    %s91 = sphi 0, %s93
    %s94 = sphi 0, %s91
    %s95 = sphi 0, %s94
    %s111 = sphi 0, %s95
    %s117 = sphi 0, %s119
    %s120 = sphi 0, %s117
    %s121 = sphi 0, %s120
    %s137 = sphi 0, %s121
    %s143 = sphi 0, %s145
    %s146 = sphi 0, %s143
    %s147 = sphi 0, %s146
    %s163 = sphi 0, %s147
    %s169 = sphi 0, %s171
    %s172 = sphi 0, %s169
    %s173 = sphi 0, %s172
    %s189 = sphi 0, %s173
  $region4: #{conv_block_forward.2} parent=0 // loop_header_branch
    %16 = sbr.rel (%p14) target = $region8
  $region5: #{conv_block_forward.2} parent=0 // loop_body
    %s18 = ssub.s32 %s13, 1
    %s19 = ssub.s32 %s13, 2
    %s20 = sadd.s32 %s13, 1
    %s21 = ssub.s32 %s13, %s20
    %p22 = scmp.eq.s32.totalorder %s21, 0
    %s24 = sadd.s32 %s23, 1
    %s25 = scalar_select %p22, %s23, %s24
    %p28 = pneg %p22
    %p29 = scmp.eq.s32.totalorder %s13, 1
    %p30 = por %p28, %p29
    %p31 = scmp.ne.s32.totalorder %s23, %s26
    %p32 = scmp.eq.s32.totalorder %s13, 0
    %p33 = por %p31, %p32
    %p34 = scmp.ne.s32.totalorder %s23, %s26
    %p35 = scmp.eq.s32.totalorder %s18, 1
    %p36 = por %p34, %p35
    %p37 = scmp.ne.s32.totalorder %s26, %s27
    %p38 = scmp.eq.s32.totalorder %s18, 0
    %p39 = por %p37, %p38
    %p40 = scmp.ne.s32.totalorder %s26, %s27
    %p41 = scmp.eq.s32.totalorder %s19, 1
    %p42 = por %p40, %p41
    %p44 = scmp.ne.s32.totalorder %s27, %s43
    %p45 = scmp.eq.s32.totalorder %s19, 0
    %p46 = por %p44, %p45
    %s48 = sadd.s32 %s47, 1
    %p51 = scmp.eq.s32.totalorder %s13, 1
    %p52 = scmp.ne.s32.totalorder %s47, %s49
    %p53 = scmp.eq.s32.totalorder %s13, 0
    %p54 = por %p52, %p53
    %p55 = scmp.ne.s32.totalorder %s47, %s49
    %p56 = scmp.eq.s32.totalorder %s18, 1
    %p57 = por %p55, %p56
    %p58 = scmp.ne.s32.totalorder %s49, %s50
    %p59 = scmp.eq.s32.totalorder %s18, 0
    %p60 = por %p58, %p59
    %p61 = scmp.ne.s32.totalorder %s49, %s50
    %p62 = scmp.eq.s32.totalorder %s19, 1
    %p63 = por %p61, %p62
    %p65 = scmp.ne.s32.totalorder %s50, %s64
    %p66 = scmp.eq.s32.totalorder %s19, 0
    %p67 = por %p65, %p66
    %s69 = sadd.s32 %s68, 1
    %p72 = scmp.eq.s32.totalorder %s13, 1
    %p73 = scmp.ne.s32.totalorder %s68, %s70
    %p74 = scmp.eq.s32.totalorder %s13, 0
    %p75 = por %p73, %p74
    %p76 = scmp.ne.s32.totalorder %s68, %s70
    %p77 = scmp.eq.s32.totalorder %s18, 1
    %p78 = por %p76, %p77
    %p79 = scmp.ne.s32.totalorder %s70, %s71
    %p80 = scmp.eq.s32.totalorder %s18, 0
    %p81 = por %p79, %p80
    %p82 = scmp.ne.s32.totalorder %s70, %s71
    %p83 = scmp.eq.s32.totalorder %s19, 1
    %p84 = por %p82, %p83
    %p86 = scmp.ne.s32.totalorder %s71, %s85
    %p87 = scmp.eq.s32.totalorder %s19, 0
    %p88 = por %p86, %p87
    %s89 = ssub.s32 %s13, %s20
    %p90 = scmp.eq.s32.totalorder %s89, 0
    %s92 = sadd.s32 %s91, 1
    %s93 = scalar_select %p90, %s91, %s92
    %p96 = pneg %p90
    %p97 = scmp.eq.s32.totalorder %s13, 1
    %p98 = por %p96, %p97
    %p99 = scmp.ne.s32.totalorder %s91, %s94
    %p100 = scmp.eq.s32.totalorder %s13, 0
    %p101 = por %p99, %p100
    %p102 = scmp.ne.s32.totalorder %s91, %s94
    %p103 = scmp.eq.s32.totalorder %s18, 1
    %p104 = por %p102, %p103
    %p105 = scmp.ne.s32.totalorder %s94, %s95
    %p106 = scmp.eq.s32.totalorder %s18, 0
    %p107 = por %p105, %p106
    %p108 = scmp.ne.s32.totalorder %s94, %s95
    %p109 = scmp.eq.s32.totalorder %s19, 1
    %p110 = por %p108, %p109
    %p112 = scmp.ne.s32.totalorder %s95, %s111
    %p113 = scmp.eq.s32.totalorder %s19, 0
    %p114 = por %p112, %p113
    %s115 = ssub.s32 %s13, %s20
    %p116 = scmp.eq.s32.totalorder %s115, 0
    %s118 = sadd.s32 %s117, 1
    %s119 = scalar_select %p116, %s117, %s118
    %p122 = pneg %p116
    %p123 = scmp.eq.s32.totalorder %s13, 1
    %p124 = por %p122, %p123
    %p125 = scmp.ne.s32.totalorder %s117, %s120
    %p126 = scmp.eq.s32.totalorder %s13, 0
    %p127 = por %p125, %p126
    %p128 = scmp.ne.s32.totalorder %s117, %s120
    %p129 = scmp.eq.s32.totalorder %s18, 1
    %p130 = por %p128, %p129
    %p131 = scmp.ne.s32.totalorder %s120, %s121
    %p132 = scmp.eq.s32.totalorder %s18, 0
    %p133 = por %p131, %p132
    %p134 = scmp.ne.s32.totalorder %s120, %s121
    %p135 = scmp.eq.s32.totalorder %s19, 1
    %p136 = por %p134, %p135
    %p138 = scmp.ne.s32.totalorder %s121, %s137
    %p139 = scmp.eq.s32.totalorder %s19, 0
    %p140 = por %p138, %p139
    %s141 = ssub.s32 %s13, %s20
    %p142 = scmp.eq.s32.totalorder %s141, 0
    %s144 = sadd.s32 %s143, 1
    %s145 = scalar_select %p142, %s143, %s144
    %p148 = pneg %p142
    %p149 = scmp.eq.s32.totalorder %s13, 1
    %p150 = por %p148, %p149
    %p151 = scmp.ne.s32.totalorder %s143, %s146
    %p152 = scmp.eq.s32.totalorder %s13, 0
    %p153 = por %p151, %p152
    %p154 = scmp.ne.s32.totalorder %s143, %s146
    %p155 = scmp.eq.s32.totalorder %s18, 1
    %p156 = por %p154, %p155
    %p157 = scmp.ne.s32.totalorder %s146, %s147
    %p158 = scmp.eq.s32.totalorder %s18, 0
    %p159 = por %p157, %p158
    %p160 = scmp.ne.s32.totalorder %s146, %s147
    %p161 = scmp.eq.s32.totalorder %s19, 1
    %p162 = por %p160, %p161
    %p164 = scmp.ne.s32.totalorder %s147, %s163
    %p165 = scmp.eq.s32.totalorder %s19, 0
    %p166 = por %p164, %p165
    %s167 = ssub.s32 %s13, %s20
    %p168 = scmp.eq.s32.totalorder %s167, 0
    %s170 = sadd.s32 %s169, 1
    %s171 = scalar_select %p168, %s169, %s170
    %p174 = pneg %p168
    %p175 = scmp.eq.s32.totalorder %s13, 1
    %p176 = por %p174, %p175
    %p177 = scmp.ne.s32.totalorder %s169, %s172
    %p178 = scmp.eq.s32.totalorder %s13, 0
    %p179 = por %p177, %p178
    %p180 = scmp.ne.s32.totalorder %s169, %s172
    %p181 = scmp.eq.s32.totalorder %s18, 1
    %p182 = por %p180, %p181
    %p183 = scmp.ne.s32.totalorder %s172, %s173
    %p184 = scmp.eq.s32.totalorder %s18, 0
    %p185 = por %p183, %p184
    %p186 = scmp.ne.s32.totalorder %s172, %s173
    %p187 = scmp.eq.s32.totalorder %s19, 1
    %p188 = por %p186, %p187
    %p190 = scmp.ne.s32.totalorder %s173, %s189
    %p191 = scmp.eq.s32.totalorder %s19, 0
    %p192 = por %p190, %p191
    %p193 = scmp.le.s32.totalorder 1, %s13
    %p194 = scmp.lt.s32.totalorder %s13, 3
    %p195 = pnand %p193, %p194
    %p196 = pneg %p195
    // Predicated region
    $region9: #{conv_block_forward.2} parent=5 // pred_check
      _
    $region10: #{conv_block_forward.2} parent=5 // pred_check_branch
      %198 = sbr.rel (%p195) target = $region12
    $region11: #{conv_block_forward.2} parent=5 // pred_region
      %s199 = ssub.s32 %s13, 1
      // Predicated region
      $region13: #{conv_block_forward.2} parent=11 // pred_check
        %p200 = pneg %p60
      $region14: #{conv_block_forward.2} parent=11 // pred_check_branch
        %202 = sbr.rel (%p200) target = $region16
      $region15: #{conv_block_forward.2} parent=11 // pred_region
        _
      $region16: #{conv_block_forward.2} parent=11 // pred_fallthru
        _
      // Predicated region
      $region17: #{conv_block_forward.2} parent=11 // pred_check
        %p203 = pneg %p81
      $region18: #{conv_block_forward.2} parent=11 // pred_check_branch
        %205 = sbr.rel (%p203) target = $region20
      $region19: #{conv_block_forward.2} parent=11 // pred_region
        _
      $region20: #{conv_block_forward.2} parent=11 // pred_fallthru
        _
    $region12: #{conv_block_forward.2} parent=5 // pred_fallthru
      _
    %p206 = scmp.lt.s32.totalorder %s13, 2
    // Predicated region
    $region21: #{conv_block_forward.2} parent=5 // pred_check
      %p207 = pneg %p206
    $region22: #{conv_block_forward.2} parent=5 // pred_check_branch
      %209 = sbr.rel (%p207) target = $region24
    $region23: #{conv_block_forward.2} parent=5 // pred_region
      // Predicated region
      $region25: #{conv_block_forward.2} parent=23 // pred_check
        %p210 = pneg %p33
      $region26: #{conv_block_forward.2} parent=23 // pred_check_branch
        %212 = sbr.rel (%p210) target = $region28
      $region27: #{conv_block_forward.2} parent=23 // pred_region
        %p213 = scmp.lt.s32.totalorder %s13, 1
        %s214 = scalar_select %p213, %s13, 1
        %s215 = smul.addr %s214, 54
        %s216 = smul.addr %s215, 8
        %s217 = scalar_lea.vmem %s0, %s216
      $region28: #{conv_block_forward.2} parent=23 // pred_fallthru
        _
    $region24: #{conv_block_forward.2} parent=5 // pred_fallthru
      _
    %p218 = scmp.le.s32.totalorder 1, %s13
    %p219 = scmp.lt.s32.totalorder %s13, 3
    %p220 = pnand %p218, %p219
    %p221 = pneg %p220
    // Predicated region
    $region29: #{conv_block_forward.2} parent=5 // pred_check
      _
    $region30: #{conv_block_forward.2} parent=5 // pred_check_branch
      %223 = sbr.rel (%p220) target = $region32
    $region31: #{conv_block_forward.2} parent=5 // pred_region
      %s224 = ssub.s32 %s13, 1
      %p225 = scmp.lt.s32.totalorder %s18, 1
      %s226 = scalar_select %p225, %s18, 1
      %s227 = smul.addr %s226, 54
      %s228 = smul.addr %s227, 8
      %s229 = scalar_lea.vmem %s0, %s228
      %p230 = pneg %p39
      %p231 = pneg %p36
      %p232 = pneg %p60
      %p233 = pneg %p57
      %p234 = pneg %p81
      %p235 = pneg %p78
      %p236 = pneg %p107
      %p237 = pneg %p104
      %p238 = scmp.lt.s32.totalorder %s18, 1
      %s239 = scalar_select %p238, %s18, 1
      %s240 = smul.addr %s239, 8
      %s241 = scalar_lea.vmem %s3, %s240
      %p242 = pneg %p133
      %p243 = pneg %p130
      %p244 = scmp.lt.s32.totalorder %s18, 1
      %s245 = scalar_select %p244, %s18, 1
      %s246 = smul.addr %s245, 8
      %s247 = scalar_lea.vmem %s4, %s246
      %p248 = pneg %p159
      %p249 = pneg %p156
      %p250 = scmp.lt.s32.totalorder %s18, 1
      %s251 = scalar_select %p250, %s18, 1
      %s252 = scalar_lea.vmem %s5, %s251
      %p253 = pneg %p185
      %p254 = pneg %p182
      %p255 = scmp.lt.s32.totalorder %s18, 1
      %s256 = scalar_select %p255, %s18, 1
      %s257 = scalar_lea.vmem %s6, %s256
      %p258 = scmp.lt.s32.totalorder %s18, 1
      %s259 = scalar_select %p258, %s18, 1
      %s260 = smul.addr %s259, 54
      %s261 = smul.addr %s260, 8
      %s262 = scalar_lea.vmem %s0, %s261
      %p263 = scmp.lt.s32.totalorder %s18, 1
      %s264 = scalar_select %p263, %s18, 1
      %s265 = smul.addr %s264, 8
      %s266 = scalar_lea.vmem %s3, %s265
      %p267 = scmp.lt.s32.totalorder %s18, 1
      %s268 = scalar_select %p267, %s18, 1
      %s269 = smul.addr %s268, 8
      %s270 = scalar_lea.vmem %s4, %s269
      %p271 = scmp.lt.s32.totalorder %s18, 1
      %s272 = scalar_select %p271, %s18, 1
      %s273 = scalar_lea.vmem %s5, %s272
      %p274 = scmp.lt.s32.totalorder %s18, 1
      %s275 = scalar_select %p274, %s18, 1
      %s276 = scalar_lea.vmem %s6, %s275
      %v278 = vld [vmem:[%s262] sm:$0xff]
      %v279 = vld [vmem:[%s262 + $0x8] sm:$0xff]
      %v280 = vld [vmem:[%s262 + $0x18] sm:$0xff]
      %v281 = vld [vmem:[%s262 + $0x20] sm:$0xff]
      %v282 = vld [vmem:[%s262 + $0x30] sm:$0xff]
      %v283 = vld [vmem:[%s262 + $0x38] sm:$0xff]
      %v284 = vld [vmem:[%s262 + $0x48] sm:$0xff]
      %v285 = vld [vmem:[%s262 + $0x50] sm:$0xff]
      %v286 = vld [vmem:[%s262 + $0x60] sm:$0xff]
      %v287 = vld [vmem:[%s262 + $0x68] sm:$0xff]
      %v288 = vld [vmem:[%s262 + $0x78] sm:$0xff]
      %v289 = vld [vmem:[%s262 + $0x80] sm:$0xff]
      %v290 = vld [vmem:[%s262 + $0x90] sm:$0xff]
      %v291 = vld [vmem:[%s262 + $0x98] sm:$0xff]
      %v292 = vld [vmem:[%s262 + $0xa8] sm:$0xff]
      %v293 = vld [vmem:[%s262 + $0xb0] sm:$0xff]
      %v294 = vld [vmem:[%s262 + $0xc0] sm:$0xff]
      %v295 = vld [vmem:[%s262 + $0xc8] sm:$0xff]
      %v296 = vld [vmem:[%s262 + $0xd8] sm:$0xff]
      %v297 = vld [vmem:[%s262 + $0xe0] sm:$0xff]
      %v298 = vld [vmem:[%s262 + $0xf0] sm:$0xff]
      %v299 = vld [vmem:[%s262 + $0xf8] sm:$0xff]
      %v300 = vld [vmem:[%s262 + $0x108] sm:$0xff]
      %v301 = vld [vmem:[%s262 + $0x110] sm:$0xff]
      %v302 = vld [vmem:[%s262 + $0x120] sm:$0xff]
      %v303 = vld [vmem:[%s262 + $0x128] sm:$0xff]
      %v304 = vld [vmem:[%s262 + $0x138] sm:$0xff]
      %v305 = vld [vmem:[%s262 + $0x140] sm:$0xff]
      %v306 = vld [vmem:[%s262 + $0x150] sm:$0xff]
      %v307 = vld [vmem:[%s262 + $0x158] sm:$0xff]
      %v308 = vld [vmem:[%s262 + $0x168] sm:$0xff]
      %v309 = vld [vmem:[%s262 + $0x170] sm:$0xff]
      %v310 = vld [vmem:[%s262 + $0x1] sm:$0xff]
      %v311 = vld [vmem:[%s262 + $0x9] sm:$0xff]
      %v312 = vld [vmem:[%s262 + $0x19] sm:$0xff]
      %v313 = vld [vmem:[%s262 + $0x21] sm:$0xff]
      %v314 = vld [vmem:[%s262 + $0x31] sm:$0xff]
      %v315 = vld [vmem:[%s262 + $0x39] sm:$0xff]
      %v316 = vld [vmem:[%s262 + $0x49] sm:$0xff]
      %v317 = vld [vmem:[%s262 + $0x51] sm:$0xff]
      %v318 = vld [vmem:[%s262 + $0x61] sm:$0xff]
      %v319 = vld [vmem:[%s262 + $0x69] sm:$0xff]
      %v320 = vld [vmem:[%s262 + $0x79] sm:$0xff]
      %v321 = vld [vmem:[%s262 + $0x81] sm:$0xff]
      %v322 = vld [vmem:[%s262 + $0x91] sm:$0xff]
      %v323 = vld [vmem:[%s262 + $0x99] sm:$0xff]
      %v324 = vld [vmem:[%s262 + $0xa9] sm:$0xff]
      %v325 = vld [vmem:[%s262 + $0xb1] sm:$0xff]
      %v326 = vld [vmem:[%s262 + $0xc1] sm:$0xff]
      %v327 = vld [vmem:[%s262 + $0xc9] sm:$0xff]
      %v328 = vld [vmem:[%s262 + $0xd9] sm:$0xff]
      %v329 = vld [vmem:[%s262 + $0xe1] sm:$0xff]
      %v330 = vld [vmem:[%s262 + $0xf1] sm:$0xff]
      %v331 = vld [vmem:[%s262 + $0xf9] sm:$0xff]
      %v332 = vld [vmem:[%s262 + $0x109] sm:$0xff]
      %v333 = vld [vmem:[%s262 + $0x111] sm:$0xff]
      %v334 = vld [vmem:[%s262 + $0x121] sm:$0xff]
      %v335 = vld [vmem:[%s262 + $0x129] sm:$0xff]
      %v336 = vld [vmem:[%s262 + $0x139] sm:$0xff]
      %v337 = vld [vmem:[%s262 + $0x141] sm:$0xff]
      %v338 = vld [vmem:[%s262 + $0x151] sm:$0xff]
      %v339 = vld [vmem:[%s262 + $0x159] sm:$0xff]
      %v340 = vld [vmem:[%s262 + $0x169] sm:$0xff]
      %v341 = vld [vmem:[%s262 + $0x171] sm:$0xff]
      %v342 = vld [vmem:[%s262 + $0x2] sm:$0xff]
      %v343 = vld [vmem:[%s262 + $0xa] sm:$0xff]
      %v344 = vld [vmem:[%s262 + $0x1a] sm:$0xff]
      %v345 = vld [vmem:[%s262 + $0x22] sm:$0xff]
      %v346 = vld [vmem:[%s262 + $0x32] sm:$0xff]
      %v347 = vld [vmem:[%s262 + $0x3a] sm:$0xff]
      %v348 = vld [vmem:[%s262 + $0x4a] sm:$0xff]
      %v349 = vld [vmem:[%s262 + $0x52] sm:$0xff]
      %v350 = vld [vmem:[%s262 + $0x62] sm:$0xff]
      %v351 = vld [vmem:[%s262 + $0x6a] sm:$0xff]
      %v352 = vld [vmem:[%s262 + $0x7a] sm:$0xff]
      %v353 = vld [vmem:[%s262 + $0x82] sm:$0xff]
      %v354 = vld [vmem:[%s262 + $0x92] sm:$0xff]
      %v355 = vld [vmem:[%s262 + $0x9a] sm:$0xff]
      %v356 = vld [vmem:[%s262 + $0xaa] sm:$0xff]
      %v357 = vld [vmem:[%s262 + $0xb2] sm:$0xff]
      %v358 = vld [vmem:[%s262 + $0xc2] sm:$0xff]
      %v359 = vld [vmem:[%s262 + $0xca] sm:$0xff]
      %v360 = vld [vmem:[%s262 + $0xda] sm:$0xff]
      %v361 = vld [vmem:[%s262 + $0xe2] sm:$0xff]
      %v362 = vld [vmem:[%s262 + $0xf2] sm:$0xff]
      %v363 = vld [vmem:[%s262 + $0xfa] sm:$0xff]
      %v364 = vld [vmem:[%s262 + $0x10a] sm:$0xff]
      %v365 = vld [vmem:[%s262 + $0x112] sm:$0xff]
      %v366 = vld [vmem:[%s262 + $0x122] sm:$0xff]
      %v367 = vld [vmem:[%s262 + $0x12a] sm:$0xff]
      %v368 = vld [vmem:[%s262 + $0x13a] sm:$0xff]
      %v369 = vld [vmem:[%s262 + $0x142] sm:$0xff]
      %v370 = vld [vmem:[%s262 + $0x152] sm:$0xff]
      %v371 = vld [vmem:[%s262 + $0x15a] sm:$0xff]
      %v372 = vld [vmem:[%s262 + $0x16a] sm:$0xff]
      %v373 = vld [vmem:[%s262 + $0x172] sm:$0xff]
      %s374 = scalar_lea.vmem %s262, 24
      %v375 = vld [vmem:[%s374] sm:$0xff]
      %v376 = vld [vmem:[%s374 + $0x8] sm:$0xff]
      %v377 = vld [vmem:[%s374 + $0x18] sm:$0xff]
      %v378 = vld [vmem:[%s374 + $0x20] sm:$0xff]
      %v379 = vld [vmem:[%s374 + $0x30] sm:$0xff]
      %v380 = vld [vmem:[%s374 + $0x38] sm:$0xff]
      %v381 = vld [vmem:[%s374 + $0x48] sm:$0xff]
      %v382 = vld [vmem:[%s374 + $0x50] sm:$0xff]
      %v383 = vld [vmem:[%s374 + $0x60] sm:$0xff]
      %v384 = vld [vmem:[%s374 + $0x68] sm:$0xff]
      %v385 = vld [vmem:[%s374 + $0x78] sm:$0xff]
      %v386 = vld [vmem:[%s374 + $0x80] sm:$0xff]
      %v387 = vld [vmem:[%s374 + $0x90] sm:$0xff]
      %v388 = vld [vmem:[%s374 + $0x98] sm:$0xff]
      %v389 = vld [vmem:[%s374 + $0xa8] sm:$0xff]
      %v390 = vld [vmem:[%s374 + $0xb0] sm:$0xff]
      %v391 = vld [vmem:[%s374 + $0xc0] sm:$0xff]
      %v392 = vld [vmem:[%s374 + $0xc8] sm:$0xff]
      %v393 = vld [vmem:[%s374 + $0xd8] sm:$0xff]
      %v394 = vld [vmem:[%s374 + $0xe0] sm:$0xff]
      %v395 = vld [vmem:[%s374 + $0xf0] sm:$0xff]
      %v396 = vld [vmem:[%s374 + $0xf8] sm:$0xff]
      %v397 = vld [vmem:[%s374 + $0x108] sm:$0xff]
      %v398 = vld [vmem:[%s374 + $0x110] sm:$0xff]
      %v399 = vld [vmem:[%s374 + $0x120] sm:$0xff]
      %v400 = vld [vmem:[%s374 + $0x128] sm:$0xff]
      %v401 = vld [vmem:[%s374 + $0x138] sm:$0xff]
      %v402 = vld [vmem:[%s374 + $0x140] sm:$0xff]
      %v403 = vld [vmem:[%s374 + $0x150] sm:$0xff]
      %v404 = vld [vmem:[%s374 + $0x158] sm:$0xff]
      %v405 = vld [vmem:[%s374 + $0x168] sm:$0xff]
      %v406 = vld [vmem:[%s374 + $0x170] sm:$0xff]
      %v407 = vld [vmem:[%s374 + $0x1] sm:$0xff]
      %v408 = vld [vmem:[%s374 + $0x9] sm:$0xff]
      %v409 = vld [vmem:[%s374 + $0x19] sm:$0xff]
      %v410 = vld [vmem:[%s374 + $0x21] sm:$0xff]
      %v411 = vld [vmem:[%s374 + $0x31] sm:$0xff]
      %v412 = vld [vmem:[%s374 + $0x39] sm:$0xff]
      %v413 = vld [vmem:[%s374 + $0x49] sm:$0xff]
      %v414 = vld [vmem:[%s374 + $0x51] sm:$0xff]
      %v415 = vld [vmem:[%s374 + $0x61] sm:$0xff]
      %v416 = vld [vmem:[%s374 + $0x69] sm:$0xff]
      %v417 = vld [vmem:[%s374 + $0x79] sm:$0xff]
      %v418 = vld [vmem:[%s374 + $0x81] sm:$0xff]
      %v419 = vld [vmem:[%s374 + $0x91] sm:$0xff]
      %v420 = vld [vmem:[%s374 + $0x99] sm:$0xff]
      %v421 = vld [vmem:[%s374 + $0xa9] sm:$0xff]
      %v422 = vld [vmem:[%s374 + $0xb1] sm:$0xff]
      %v423 = vld [vmem:[%s374 + $0xc1] sm:$0xff]
      %v424 = vld [vmem:[%s374 + $0xc9] sm:$0xff]
      %v425 = vld [vmem:[%s374 + $0xd9] sm:$0xff]
      %v426 = vld [vmem:[%s374 + $0xe1] sm:$0xff]
      %v427 = vld [vmem:[%s374 + $0xf1] sm:$0xff]
      %v428 = vld [vmem:[%s374 + $0xf9] sm:$0xff]
      %v429 = vld [vmem:[%s374 + $0x109] sm:$0xff]
      %v430 = vld [vmem:[%s374 + $0x111] sm:$0xff]
      %v431 = vld [vmem:[%s374 + $0x121] sm:$0xff]
      %v432 = vld [vmem:[%s374 + $0x129] sm:$0xff]
      %v433 = vld [vmem:[%s374 + $0x139] sm:$0xff]
      %v434 = vld [vmem:[%s374 + $0x141] sm:$0xff]
      %v435 = vld [vmem:[%s374 + $0x151] sm:$0xff]
      %v436 = vld [vmem:[%s374 + $0x159] sm:$0xff]
      %v437 = vld [vmem:[%s374 + $0x169] sm:$0xff]
      %v438 = vld [vmem:[%s374 + $0x171] sm:$0xff]
      %v439 = vld [vmem:[%s374 + $0x2] sm:$0xff]
      %v440 = vld [vmem:[%s374 + $0xa] sm:$0xff]
      %v441 = vld [vmem:[%s374 + $0x1a] sm:$0xff]
      %v442 = vld [vmem:[%s374 + $0x22] sm:$0xff]
      %v443 = vld [vmem:[%s374 + $0x32] sm:$0xff]
      %v444 = vld [vmem:[%s374 + $0x3a] sm:$0xff]
      %v445 = vld [vmem:[%s374 + $0x4a] sm:$0xff]
      %v446 = vld [vmem:[%s374 + $0x52] sm:$0xff]
      %v447 = vld [vmem:[%s374 + $0x62] sm:$0xff]
      %v448 = vld [vmem:[%s374 + $0x6a] sm:$0xff]
      %v449 = vld [vmem:[%s374 + $0x7a] sm:$0xff]
      %v450 = vld [vmem:[%s374 + $0x82] sm:$0xff]
      %v451 = vld [vmem:[%s374 + $0x92] sm:$0xff]
      %v452 = vld [vmem:[%s374 + $0x9a] sm:$0xff]
      %v453 = vld [vmem:[%s374 + $0xaa] sm:$0xff]
      %v454 = vld [vmem:[%s374 + $0xb2] sm:$0xff]
      %v455 = vld [vmem:[%s374 + $0xc2] sm:$0xff]
      %v456 = vld [vmem:[%s374 + $0xca] sm:$0xff]
      %v457 = vld [vmem:[%s374 + $0xda] sm:$0xff]
      %v458 = vld [vmem:[%s374 + $0xe2] sm:$0xff]
      %v459 = vld [vmem:[%s374 + $0xf2] sm:$0xff]
      %v460 = vld [vmem:[%s374 + $0xfa] sm:$0xff]
      %v461 = vld [vmem:[%s374 + $0x10a] sm:$0xff]
      %v462 = vld [vmem:[%s374 + $0x112] sm:$0xff]
      %v463 = vld [vmem:[%s374 + $0x122] sm:$0xff]
      %v464 = vld [vmem:[%s374 + $0x12a] sm:$0xff]
      %v465 = vld [vmem:[%s374 + $0x13a] sm:$0xff]
      %v466 = vld [vmem:[%s374 + $0x142] sm:$0xff]
      %v467 = vld [vmem:[%s374 + $0x152] sm:$0xff]
      %v468 = vld [vmem:[%s374 + $0x15a] sm:$0xff]
      %v469 = vld [vmem:[%s374 + $0x16a] sm:$0xff]
      %v470 = vld [vmem:[%s374 + $0x172] sm:$0xff]
      %s471 = scalar_lea.vmem %s262, 48
      %v472 = vld [vmem:[%s471] sm:$0xff]
      %v473 = vld [vmem:[%s471 + $0x8] sm:$0xff]
      %v474 = vld [vmem:[%s471 + $0x18] sm:$0xff]
      %v475 = vld [vmem:[%s471 + $0x20] sm:$0xff]
      %v476 = vld [vmem:[%s471 + $0x30] sm:$0xff]
      %v477 = vld [vmem:[%s471 + $0x38] sm:$0xff]
      %v478 = vld [vmem:[%s471 + $0x48] sm:$0xff]
      %v479 = vld [vmem:[%s471 + $0x50] sm:$0xff]
      %v480 = vld [vmem:[%s471 + $0x60] sm:$0xff]
      %v481 = vld [vmem:[%s471 + $0x68] sm:$0xff]
      %v482 = vld [vmem:[%s471 + $0x78] sm:$0xff]
      %v483 = vld [vmem:[%s471 + $0x80] sm:$0xff]
      %v484 = vld [vmem:[%s471 + $0x90] sm:$0xff]
      %v485 = vld [vmem:[%s471 + $0x98] sm:$0xff]
      %v486 = vld [vmem:[%s471 + $0xa8] sm:$0xff]
      %v487 = vld [vmem:[%s471 + $0xb0] sm:$0xff]
      %v488 = vld [vmem:[%s471 + $0xc0] sm:$0xff]
      %v489 = vld [vmem:[%s471 + $0xc8] sm:$0xff]
      %v490 = vld [vmem:[%s471 + $0xd8] sm:$0xff]
      %v491 = vld [vmem:[%s471 + $0xe0] sm:$0xff]
      %v492 = vld [vmem:[%s471 + $0xf0] sm:$0xff]
      %v493 = vld [vmem:[%s471 + $0xf8] sm:$0xff]
      %v494 = vld [vmem:[%s471 + $0x108] sm:$0xff]
      %v495 = vld [vmem:[%s471 + $0x110] sm:$0xff]
      %v496 = vld [vmem:[%s471 + $0x120] sm:$0xff]
      %v497 = vld [vmem:[%s471 + $0x128] sm:$0xff]
      %v498 = vld [vmem:[%s471 + $0x138] sm:$0xff]
      %v499 = vld [vmem:[%s471 + $0x140] sm:$0xff]
      %v500 = vld [vmem:[%s471 + $0x150] sm:$0xff]
      %v501 = vld [vmem:[%s471 + $0x158] sm:$0xff]
      %v502 = vld [vmem:[%s471 + $0x168] sm:$0xff]
      %v503 = vld [vmem:[%s471 + $0x170] sm:$0xff]
      %v504 = vld [vmem:[%s471 + $0x1] sm:$0xff]
      %v505 = vld [vmem:[%s471 + $0x9] sm:$0xff]
      %v506 = vld [vmem:[%s471 + $0x19] sm:$0xff]
      %v507 = vld [vmem:[%s471 + $0x21] sm:$0xff]
      %v508 = vld [vmem:[%s471 + $0x31] sm:$0xff]
      %v509 = vld [vmem:[%s471 + $0x39] sm:$0xff]
      %v510 = vld [vmem:[%s471 + $0x49] sm:$0xff]
      %v511 = vld [vmem:[%s471 + $0x51] sm:$0xff]
      %v512 = vld [vmem:[%s471 + $0x61] sm:$0xff]
      %v513 = vld [vmem:[%s471 + $0x69] sm:$0xff]
      %v514 = vld [vmem:[%s471 + $0x79] sm:$0xff]
      %v515 = vld [vmem:[%s471 + $0x81] sm:$0xff]
      %v516 = vld [vmem:[%s471 + $0x91] sm:$0xff]
      %v517 = vld [vmem:[%s471 + $0x99] sm:$0xff]
      %v518 = vld [vmem:[%s471 + $0xa9] sm:$0xff]
      %v519 = vld [vmem:[%s471 + $0xb1] sm:$0xff]
      %v520 = vld [vmem:[%s471 + $0xc1] sm:$0xff]
      %v521 = vld [vmem:[%s471 + $0xc9] sm:$0xff]
      %v522 = vld [vmem:[%s471 + $0xd9] sm:$0xff]
      %v523 = vld [vmem:[%s471 + $0xe1] sm:$0xff]
      %v524 = vld [vmem:[%s471 + $0xf1] sm:$0xff]
      %v525 = vld [vmem:[%s471 + $0xf9] sm:$0xff]
      %v526 = vld [vmem:[%s471 + $0x109] sm:$0xff]
      %v527 = vld [vmem:[%s471 + $0x111] sm:$0xff]
      %v528 = vld [vmem:[%s471 + $0x121] sm:$0xff]
      %v529 = vld [vmem:[%s471 + $0x129] sm:$0xff]
      %v530 = vld [vmem:[%s471 + $0x139] sm:$0xff]
      %v531 = vld [vmem:[%s471 + $0x141] sm:$0xff]
      %v532 = vld [vmem:[%s471 + $0x151] sm:$0xff]
      %v533 = vld [vmem:[%s471 + $0x159] sm:$0xff]
      %v534 = vld [vmem:[%s471 + $0x169] sm:$0xff]
      %v535 = vld [vmem:[%s471 + $0x171] sm:$0xff]
      %v536 = vld [vmem:[%s471 + $0x2] sm:$0xff]
      %v537 = vld [vmem:[%s471 + $0xa] sm:$0xff]
      %v538 = vld [vmem:[%s471 + $0x1a] sm:$0xff]
      %v539 = vld [vmem:[%s471 + $0x22] sm:$0xff]
      %v540 = vld [vmem:[%s471 + $0x32] sm:$0xff]
      %v541 = vld [vmem:[%s471 + $0x3a] sm:$0xff]
      %v542 = vld [vmem:[%s471 + $0x4a] sm:$0xff]
      %v543 = vld [vmem:[%s471 + $0x52] sm:$0xff]
      %v544 = vld [vmem:[%s471 + $0x62] sm:$0xff]
      %v545 = vld [vmem:[%s471 + $0x6a] sm:$0xff]
      %v546 = vld [vmem:[%s471 + $0x7a] sm:$0xff]
      %v547 = vld [vmem:[%s471 + $0x82] sm:$0xff]
      %v548 = vld [vmem:[%s471 + $0x92] sm:$0xff]
      %v549 = vld [vmem:[%s471 + $0x9a] sm:$0xff]
      %v550 = vld [vmem:[%s471 + $0xaa] sm:$0xff]
      %v551 = vld [vmem:[%s471 + $0xb2] sm:$0xff]
      %v552 = vld [vmem:[%s471 + $0xc2] sm:$0xff]
      %v553 = vld [vmem:[%s471 + $0xca] sm:$0xff]
      %v554 = vld [vmem:[%s471 + $0xda] sm:$0xff]
      %v555 = vld [vmem:[%s471 + $0xe2] sm:$0xff]
      %v556 = vld [vmem:[%s471 + $0xf2] sm:$0xff]
      %v557 = vld [vmem:[%s471 + $0xfa] sm:$0xff]
      %v558 = vld [vmem:[%s471 + $0x10a] sm:$0xff]
      %v559 = vld [vmem:[%s471 + $0x112] sm:$0xff]
      %v560 = vld [vmem:[%s471 + $0x122] sm:$0xff]
      %v561 = vld [vmem:[%s471 + $0x12a] sm:$0xff]
      %v562 = vld [vmem:[%s471 + $0x13a] sm:$0xff]
      %v563 = vld [vmem:[%s471 + $0x142] sm:$0xff]
      %v564 = vld [vmem:[%s471 + $0x152] sm:$0xff]
      %v565 = vld [vmem:[%s471 + $0x15a] sm:$0xff]
      %v566 = vld [vmem:[%s471 + $0x16a] sm:$0xff]
      %v567 = vld [vmem:[%s471 + $0x172] sm:$0xff]
      %600 = vrot.lane.b32.xlu0 %v310, 4
      %v601 = vpop.permute.xlu0 %600
      %602 = vrot.lane.b32.xlu0 %v311, 4
      %v603 = vpop.permute.xlu0 %602
      %604 = vrot.lane.b32.xlu0 %v312, 4
      %v605 = vpop.permute.xlu0 %604
      %606 = vrot.lane.b32.xlu0 %v313, 4
      %v607 = vpop.permute.xlu0 %606
      %608 = vrot.lane.b32.xlu0 %v314, 4
      %v609 = vpop.permute.xlu0 %608
      %610 = vrot.lane.b32.xlu0 %v315, 4
      %v611 = vpop.permute.xlu0 %610
      %612 = vrot.lane.b32.xlu0 %v316, 4
      %v613 = vpop.permute.xlu0 %612
      %614 = vrot.lane.b32.xlu0 %v317, 4
      %v615 = vpop.permute.xlu0 %614
      %616 = vrot.lane.b32.xlu0 %v318, 4
      %v617 = vpop.permute.xlu0 %616
      %618 = vrot.lane.b32.xlu0 %v319, 4
      %v619 = vpop.permute.xlu0 %618
      %620 = vrot.lane.b32.xlu0 %v320, 4
      %v621 = vpop.permute.xlu0 %620
      %622 = vrot.lane.b32.xlu0 %v321, 4
      %v623 = vpop.permute.xlu0 %622
      %624 = vrot.lane.b32.xlu0 %v322, 4
      %v625 = vpop.permute.xlu0 %624
      %626 = vrot.lane.b32.xlu0 %v323, 4
      %v627 = vpop.permute.xlu0 %626
      %628 = vrot.lane.b32.xlu0 %v324, 4
      %v629 = vpop.permute.xlu0 %628
      %630 = vrot.lane.b32.xlu0 %v325, 4
      %v631 = vpop.permute.xlu0 %630
      %632 = vrot.lane.b32.xlu0 %v326, 4
      %v633 = vpop.permute.xlu0 %632
      %634 = vrot.lane.b32.xlu0 %v327, 4
      %v635 = vpop.permute.xlu0 %634
      %636 = vrot.lane.b32.xlu0 %v328, 4
      %v637 = vpop.permute.xlu0 %636
      %638 = vrot.lane.b32.xlu0 %v329, 4
      %v639 = vpop.permute.xlu0 %638
      %640 = vrot.lane.b32.xlu0 %v330, 4
      %v641 = vpop.permute.xlu0 %640
      %642 = vrot.lane.b32.xlu0 %v331, 4
      %v643 = vpop.permute.xlu0 %642
      %644 = vrot.lane.b32.xlu0 %v332, 4
      %v645 = vpop.permute.xlu0 %644
      %646 = vrot.lane.b32.xlu0 %v333, 4
      %v647 = vpop.permute.xlu0 %646
      %648 = vrot.lane.b32.xlu0 %v334, 4
      %v649 = vpop.permute.xlu0 %648
      %650 = vrot.lane.b32.xlu0 %v335, 4
      %v651 = vpop.permute.xlu0 %650
      %652 = vrot.lane.b32.xlu0 %v336, 4
      %v653 = vpop.permute.xlu0 %652
      %654 = vrot.lane.b32.xlu0 %v337, 4
      %v655 = vpop.permute.xlu0 %654
      %656 = vrot.lane.b32.xlu0 %v338, 4
      %v657 = vpop.permute.xlu0 %656
      %658 = vrot.lane.b32.xlu0 %v339, 4
      %v659 = vpop.permute.xlu0 %658
      %660 = vrot.lane.b32.xlu0 %v340, 4
      %v661 = vpop.permute.xlu0 %660
      %662 = vrot.lane.b32.xlu0 %v341, 4
      %v663 = vpop.permute.xlu0 %662
      %728 = vrot.lane.b32.xlu0 %v342, 8
      %v729 = vpop.permute.xlu0 %728
      %730 = vrot.lane.b32.xlu0 %v343, 8
      %v731 = vpop.permute.xlu0 %730
      %732 = vrot.lane.b32.xlu0 %v344, 8
      %v733 = vpop.permute.xlu0 %732
      %734 = vrot.lane.b32.xlu0 %v345, 8
      %v735 = vpop.permute.xlu0 %734
      %736 = vrot.lane.b32.xlu0 %v346, 8
      %v737 = vpop.permute.xlu0 %736
      %738 = vrot.lane.b32.xlu0 %v347, 8
      %v739 = vpop.permute.xlu0 %738
      %740 = vrot.lane.b32.xlu0 %v348, 8
      %v741 = vpop.permute.xlu0 %740
      %742 = vrot.lane.b32.xlu0 %v349, 8
      %v743 = vpop.permute.xlu0 %742
      %744 = vrot.lane.b32.xlu0 %v350, 8
      %v745 = vpop.permute.xlu0 %744
      %746 = vrot.lane.b32.xlu0 %v351, 8
      %v747 = vpop.permute.xlu0 %746
      %748 = vrot.lane.b32.xlu0 %v352, 8
      %v749 = vpop.permute.xlu0 %748
      %750 = vrot.lane.b32.xlu0 %v353, 8
      %v751 = vpop.permute.xlu0 %750
      %752 = vrot.lane.b32.xlu0 %v354, 8
      %v753 = vpop.permute.xlu0 %752
      %754 = vrot.lane.b32.xlu0 %v355, 8
      %v755 = vpop.permute.xlu0 %754
      %756 = vrot.lane.b32.xlu0 %v356, 8
      %v757 = vpop.permute.xlu0 %756
      %758 = vrot.lane.b32.xlu0 %v357, 8
      %v759 = vpop.permute.xlu0 %758
      %760 = vrot.lane.b32.xlu0 %v358, 8
      %v761 = vpop.permute.xlu0 %760
      %762 = vrot.lane.b32.xlu0 %v359, 8
      %v763 = vpop.permute.xlu0 %762
      %764 = vrot.lane.b32.xlu0 %v360, 8
      %v765 = vpop.permute.xlu0 %764
      %766 = vrot.lane.b32.xlu0 %v361, 8
      %v767 = vpop.permute.xlu0 %766
      %768 = vrot.lane.b32.xlu0 %v362, 8
      %v769 = vpop.permute.xlu0 %768
      %770 = vrot.lane.b32.xlu0 %v363, 8
      %v771 = vpop.permute.xlu0 %770
      %772 = vrot.lane.b32.xlu0 %v364, 8
      %v773 = vpop.permute.xlu0 %772
      %774 = vrot.lane.b32.xlu0 %v365, 8
      %v775 = vpop.permute.xlu0 %774
      %776 = vrot.lane.b32.xlu0 %v366, 8
      %v777 = vpop.permute.xlu0 %776
      %778 = vrot.lane.b32.xlu0 %v367, 8
      %v779 = vpop.permute.xlu0 %778
      %780 = vrot.lane.b32.xlu0 %v368, 8
      %v781 = vpop.permute.xlu0 %780
      %782 = vrot.lane.b32.xlu0 %v369, 8
      %v783 = vpop.permute.xlu0 %782
      %784 = vrot.lane.b32.xlu0 %v370, 8
      %v785 = vpop.permute.xlu0 %784
      %786 = vrot.lane.b32.xlu0 %v371, 8
      %v787 = vpop.permute.xlu0 %786
      %788 = vrot.lane.b32.xlu0 %v372, 8
      %v789 = vpop.permute.xlu0 %788
      %790 = vrot.lane.b32.xlu0 %v373, 8
      %v791 = vpop.permute.xlu0 %790
      %856 = vrot.lane.b32.xlu0 %v375, 12
      %v857 = vpop.permute.xlu0 %856
      %858 = vrot.lane.b32.xlu0 %v376, 12
      %v859 = vpop.permute.xlu0 %858
      %860 = vrot.lane.b32.xlu0 %v377, 12
      %v861 = vpop.permute.xlu0 %860
      %862 = vrot.lane.b32.xlu0 %v378, 12
      %v863 = vpop.permute.xlu0 %862
      %864 = vrot.lane.b32.xlu0 %v379, 12
      %v865 = vpop.permute.xlu0 %864
      %866 = vrot.lane.b32.xlu0 %v380, 12
      %v867 = vpop.permute.xlu0 %866
      %868 = vrot.lane.b32.xlu0 %v381, 12
      %v869 = vpop.permute.xlu0 %868
      %870 = vrot.lane.b32.xlu0 %v382, 12
      %v871 = vpop.permute.xlu0 %870
      %872 = vrot.lane.b32.xlu0 %v383, 12
      %v873 = vpop.permute.xlu0 %872
      %874 = vrot.lane.b32.xlu0 %v384, 12
      %v875 = vpop.permute.xlu0 %874
      %876 = vrot.lane.b32.xlu0 %v385, 12
      %v877 = vpop.permute.xlu0 %876
      %878 = vrot.lane.b32.xlu0 %v386, 12
      %v879 = vpop.permute.xlu0 %878
      %880 = vrot.lane.b32.xlu0 %v387, 12
      %v881 = vpop.permute.xlu0 %880
      %882 = vrot.lane.b32.xlu0 %v388, 12
      %v883 = vpop.permute.xlu0 %882
      %884 = vrot.lane.b32.xlu0 %v389, 12
      %v885 = vpop.permute.xlu0 %884
      %886 = vrot.lane.b32.xlu0 %v390, 12
      %v887 = vpop.permute.xlu0 %886
      %888 = vrot.lane.b32.xlu0 %v391, 12
      %v889 = vpop.permute.xlu0 %888
      %890 = vrot.lane.b32.xlu0 %v392, 12
      %v891 = vpop.permute.xlu0 %890
      %892 = vrot.lane.b32.xlu0 %v393, 12
      %v893 = vpop.permute.xlu0 %892
      %894 = vrot.lane.b32.xlu0 %v394, 12
      %v895 = vpop.permute.xlu0 %894
      %896 = vrot.lane.b32.xlu0 %v395, 12
      %v897 = vpop.permute.xlu0 %896
      %898 = vrot.lane.b32.xlu0 %v396, 12
      %v899 = vpop.permute.xlu0 %898
      %900 = vrot.lane.b32.xlu0 %v397, 12
      %v901 = vpop.permute.xlu0 %900
      %902 = vrot.lane.b32.xlu0 %v398, 12
      %v903 = vpop.permute.xlu0 %902
      %904 = vrot.lane.b32.xlu0 %v399, 12
      %v905 = vpop.permute.xlu0 %904
      %906 = vrot.lane.b32.xlu0 %v400, 12
      %v907 = vpop.permute.xlu0 %906
      %908 = vrot.lane.b32.xlu0 %v401, 12
      %v909 = vpop.permute.xlu0 %908
      %910 = vrot.lane.b32.xlu0 %v402, 12
      %v911 = vpop.permute.xlu0 %910
      %912 = vrot.lane.b32.xlu0 %v403, 12
      %v913 = vpop.permute.xlu0 %912
      %914 = vrot.lane.b32.xlu0 %v404, 12
      %v915 = vpop.permute.xlu0 %914
      %916 = vrot.lane.b32.xlu0 %v405, 12
      %v917 = vpop.permute.xlu0 %916
      %918 = vrot.lane.b32.xlu0 %v406, 12
      %v919 = vpop.permute.xlu0 %918
      %984 = vrot.lane.b32.xlu0 %v407, 16
      %v985 = vpop.permute.xlu0 %984
      %986 = vrot.lane.b32.xlu0 %v408, 16
      %v987 = vpop.permute.xlu0 %986
      %988 = vrot.lane.b32.xlu0 %v409, 16
      %v989 = vpop.permute.xlu0 %988
      %990 = vrot.lane.b32.xlu0 %v410, 16
      %v991 = vpop.permute.xlu0 %990
      %992 = vrot.lane.b32.xlu0 %v411, 16
      %v993 = vpop.permute.xlu0 %992
      %994 = vrot.lane.b32.xlu0 %v412, 16
      %v995 = vpop.permute.xlu0 %994
      %996 = vrot.lane.b32.xlu0 %v413, 16
      %v997 = vpop.permute.xlu0 %996
      %998 = vrot.lane.b32.xlu0 %v414, 16
      %v999 = vpop.permute.xlu0 %998
      %1000 = vrot.lane.b32.xlu0 %v415, 16
      %v1001 = vpop.permute.xlu0 %1000
      %1002 = vrot.lane.b32.xlu0 %v416, 16
      %v1003 = vpop.permute.xlu0 %1002
      %1004 = vrot.lane.b32.xlu0 %v417, 16
      %v1005 = vpop.permute.xlu0 %1004
      %1006 = vrot.lane.b32.xlu0 %v418, 16
      %v1007 = vpop.permute.xlu0 %1006
      %1008 = vrot.lane.b32.xlu0 %v419, 16
      %v1009 = vpop.permute.xlu0 %1008
      %1010 = vrot.lane.b32.xlu0 %v420, 16
      %v1011 = vpop.permute.xlu0 %1010
      %1012 = vrot.lane.b32.xlu0 %v421, 16
      %v1013 = vpop.permute.xlu0 %1012
      %1014 = vrot.lane.b32.xlu0 %v422, 16
      %v1015 = vpop.permute.xlu0 %1014
      %1016 = vrot.lane.b32.xlu0 %v423, 16
      %v1017 = vpop.permute.xlu0 %1016
      %1018 = vrot.lane.b32.xlu0 %v424, 16
      %v1019 = vpop.permute.xlu0 %1018
      %1020 = vrot.lane.b32.xlu0 %v425, 16
      %v1021 = vpop.permute.xlu0 %1020
      %1022 = vrot.lane.b32.xlu0 %v426, 16
      %v1023 = vpop.permute.xlu0 %1022
      %1024 = vrot.lane.b32.xlu0 %v427, 16
      %v1025 = vpop.permute.xlu0 %1024
      %1026 = vrot.lane.b32.xlu0 %v428, 16
      %v1027 = vpop.permute.xlu0 %1026
      %1028 = vrot.lane.b32.xlu0 %v429, 16
      %v1029 = vpop.permute.xlu0 %1028
      %1030 = vrot.lane.b32.xlu0 %v430, 16
      %v1031 = vpop.permute.xlu0 %1030
      %1032 = vrot.lane.b32.xlu0 %v431, 16
      %v1033 = vpop.permute.xlu0 %1032
      %1034 = vrot.lane.b32.xlu0 %v432, 16
      %v1035 = vpop.permute.xlu0 %1034
      %1036 = vrot.lane.b32.xlu0 %v433, 16
      %v1037 = vpop.permute.xlu0 %1036
      %1038 = vrot.lane.b32.xlu0 %v434, 16
      %v1039 = vpop.permute.xlu0 %1038
      %1040 = vrot.lane.b32.xlu0 %v435, 16
      %v1041 = vpop.permute.xlu0 %1040
      %1042 = vrot.lane.b32.xlu0 %v436, 16
      %v1043 = vpop.permute.xlu0 %1042
      %1044 = vrot.lane.b32.xlu0 %v437, 16
      %v1045 = vpop.permute.xlu0 %1044
      %1046 = vrot.lane.b32.xlu0 %v438, 16
      %v1047 = vpop.permute.xlu0 %1046
      %1112 = vrot.lane.b32.xlu0 %v439, 20
      %v1113 = vpop.permute.xlu0 %1112
      %1114 = vrot.lane.b32.xlu0 %v440, 20
      %v1115 = vpop.permute.xlu0 %1114
      %1116 = vrot.lane.b32.xlu0 %v441, 20
      %v1117 = vpop.permute.xlu0 %1116
      %1118 = vrot.lane.b32.xlu0 %v442, 20
      %v1119 = vpop.permute.xlu0 %1118
      %1120 = vrot.lane.b32.xlu0 %v443, 20
      %v1121 = vpop.permute.xlu0 %1120
      %1122 = vrot.lane.b32.xlu0 %v444, 20
      %v1123 = vpop.permute.xlu0 %1122
      %1124 = vrot.lane.b32.xlu0 %v445, 20
      %v1125 = vpop.permute.xlu0 %1124
      %1126 = vrot.lane.b32.xlu0 %v446, 20
      %v1127 = vpop.permute.xlu0 %1126
      %1128 = vrot.lane.b32.xlu0 %v447, 20
      %v1129 = vpop.permute.xlu0 %1128
      %1130 = vrot.lane.b32.xlu0 %v448, 20
      %v1131 = vpop.permute.xlu0 %1130
      %1132 = vrot.lane.b32.xlu0 %v449, 20
      %v1133 = vpop.permute.xlu0 %1132
      %1134 = vrot.lane.b32.xlu0 %v450, 20
      %v1135 = vpop.permute.xlu0 %1134
      %1136 = vrot.lane.b32.xlu0 %v451, 20
      %v1137 = vpop.permute.xlu0 %1136
      %1138 = vrot.lane.b32.xlu0 %v452, 20
      %v1139 = vpop.permute.xlu0 %1138
      %1140 = vrot.lane.b32.xlu0 %v453, 20
      %v1141 = vpop.permute.xlu0 %1140
      %1142 = vrot.lane.b32.xlu0 %v454, 20
      %v1143 = vpop.permute.xlu0 %1142
      %1144 = vrot.lane.b32.xlu0 %v455, 20
      %v1145 = vpop.permute.xlu0 %1144
      %1146 = vrot.lane.b32.xlu0 %v456, 20
      %v1147 = vpop.permute.xlu0 %1146
      %1148 = vrot.lane.b32.xlu0 %v457, 20
      %v1149 = vpop.permute.xlu0 %1148
      %1150 = vrot.lane.b32.xlu0 %v458, 20
      %v1151 = vpop.permute.xlu0 %1150
      %1152 = vrot.lane.b32.xlu0 %v459, 20
      %v1153 = vpop.permute.xlu0 %1152
      %1154 = vrot.lane.b32.xlu0 %v460, 20
      %v1155 = vpop.permute.xlu0 %1154
      %1156 = vrot.lane.b32.xlu0 %v461, 20
      %v1157 = vpop.permute.xlu0 %1156
      %1158 = vrot.lane.b32.xlu0 %v462, 20
      %v1159 = vpop.permute.xlu0 %1158
      %1160 = vrot.lane.b32.xlu0 %v463, 20
      %v1161 = vpop.permute.xlu0 %1160
      %1162 = vrot.lane.b32.xlu0 %v464, 20
      %v1163 = vpop.permute.xlu0 %1162
      %1164 = vrot.lane.b32.xlu0 %v465, 20
      %v1165 = vpop.permute.xlu0 %1164
      %1166 = vrot.lane.b32.xlu0 %v466, 20
      %v1167 = vpop.permute.xlu0 %1166
      %1168 = vrot.lane.b32.xlu0 %v467, 20
      %v1169 = vpop.permute.xlu0 %1168
      %1170 = vrot.lane.b32.xlu0 %v468, 20
      %v1171 = vpop.permute.xlu0 %1170
      %1172 = vrot.lane.b32.xlu0 %v469, 20
      %v1173 = vpop.permute.xlu0 %1172
      %1174 = vrot.lane.b32.xlu0 %v470, 20
      %v1175 = vpop.permute.xlu0 %1174
      %1240 = vrot.lane.b32.xlu0 %v472, 24
      %v1241 = vpop.permute.xlu0 %1240
      %1242 = vrot.lane.b32.xlu0 %v473, 24
      %v1243 = vpop.permute.xlu0 %1242
      %1244 = vrot.lane.b32.xlu0 %v474, 24
      %v1245 = vpop.permute.xlu0 %1244
      %1246 = vrot.lane.b32.xlu0 %v475, 24
      %v1247 = vpop.permute.xlu0 %1246
      %1248 = vrot.lane.b32.xlu0 %v476, 24
      %v1249 = vpop.permute.xlu0 %1248
      %1250 = vrot.lane.b32.xlu0 %v477, 24
      %v1251 = vpop.permute.xlu0 %1250
      %1252 = vrot.lane.b32.xlu0 %v478, 24
      %v1253 = vpop.permute.xlu0 %1252
      %1254 = vrot.lane.b32.xlu0 %v479, 24
      %v1255 = vpop.permute.xlu0 %1254
      %1256 = vrot.lane.b32.xlu0 %v480, 24
      %v1257 = vpop.permute.xlu0 %1256
      %1258 = vrot.lane.b32.xlu0 %v481, 24
      %v1259 = vpop.permute.xlu0 %1258
      %1260 = vrot.lane.b32.xlu0 %v482, 24
      %v1261 = vpop.permute.xlu0 %1260
      %1262 = vrot.lane.b32.xlu0 %v483, 24
      %v1263 = vpop.permute.xlu0 %1262
      %1264 = vrot.lane.b32.xlu0 %v484, 24
      %v1265 = vpop.permute.xlu0 %1264
      %1266 = vrot.lane.b32.xlu0 %v485, 24
      %v1267 = vpop.permute.xlu0 %1266
      %1268 = vrot.lane.b32.xlu0 %v486, 24
      %v1269 = vpop.permute.xlu0 %1268
      %1270 = vrot.lane.b32.xlu0 %v487, 24
      %v1271 = vpop.permute.xlu0 %1270
      %1272 = vrot.lane.b32.xlu0 %v488, 24
      %v1273 = vpop.permute.xlu0 %1272
      %1274 = vrot.lane.b32.xlu0 %v489, 24
      %v1275 = vpop.permute.xlu0 %1274
      %1276 = vrot.lane.b32.xlu0 %v490, 24
      %v1277 = vpop.permute.xlu0 %1276
      %1278 = vrot.lane.b32.xlu0 %v491, 24
      %v1279 = vpop.permute.xlu0 %1278
      %1280 = vrot.lane.b32.xlu0 %v492, 24
      %v1281 = vpop.permute.xlu0 %1280
      %1282 = vrot.lane.b32.xlu0 %v493, 24
      %v1283 = vpop.permute.xlu0 %1282
      %1284 = vrot.lane.b32.xlu0 %v494, 24
      %v1285 = vpop.permute.xlu0 %1284
      %1286 = vrot.lane.b32.xlu0 %v495, 24
      %v1287 = vpop.permute.xlu0 %1286
      %1288 = vrot.lane.b32.xlu0 %v496, 24
      %v1289 = vpop.permute.xlu0 %1288
      %1290 = vrot.lane.b32.xlu0 %v497, 24
      %v1291 = vpop.permute.xlu0 %1290
      %1292 = vrot.lane.b32.xlu0 %v498, 24
      %v1293 = vpop.permute.xlu0 %1292
      %1294 = vrot.lane.b32.xlu0 %v499, 24
      %v1295 = vpop.permute.xlu0 %1294
      %1296 = vrot.lane.b32.xlu0 %v500, 24
      %v1297 = vpop.permute.xlu0 %1296
      %1298 = vrot.lane.b32.xlu0 %v501, 24
      %v1299 = vpop.permute.xlu0 %1298
      %1300 = vrot.lane.b32.xlu0 %v502, 24
      %v1301 = vpop.permute.xlu0 %1300
      %1302 = vrot.lane.b32.xlu0 %v503, 24
      %v1303 = vpop.permute.xlu0 %1302
      %1368 = vrot.lane.b32.xlu0 %v504, 28
      %v1369 = vpop.permute.xlu0 %1368
      %1370 = vrot.lane.b32.xlu0 %v505, 28
      %v1371 = vpop.permute.xlu0 %1370
      %1372 = vrot.lane.b32.xlu0 %v506, 28
      %v1373 = vpop.permute.xlu0 %1372
      %1374 = vrot.lane.b32.xlu0 %v507, 28
      %v1375 = vpop.permute.xlu0 %1374
      %1376 = vrot.lane.b32.xlu0 %v508, 28
      %v1377 = vpop.permute.xlu0 %1376
      %1378 = vrot.lane.b32.xlu0 %v509, 28
      %v1379 = vpop.permute.xlu0 %1378
      %1380 = vrot.lane.b32.xlu0 %v510, 28
      %v1381 = vpop.permute.xlu0 %1380
      %1382 = vrot.lane.b32.xlu0 %v511, 28
      %v1383 = vpop.permute.xlu0 %1382
      %1384 = vrot.lane.b32.xlu0 %v512, 28
      %v1385 = vpop.permute.xlu0 %1384
      %1386 = vrot.lane.b32.xlu0 %v513, 28
      %v1387 = vpop.permute.xlu0 %1386
      %1388 = vrot.lane.b32.xlu0 %v514, 28
      %v1389 = vpop.permute.xlu0 %1388
      %1390 = vrot.lane.b32.xlu0 %v515, 28
      %v1391 = vpop.permute.xlu0 %1390
      %1392 = vrot.lane.b32.xlu0 %v516, 28
      %v1393 = vpop.permute.xlu0 %1392
      %1394 = vrot.lane.b32.xlu0 %v517, 28
      %v1395 = vpop.permute.xlu0 %1394
      %1396 = vrot.lane.b32.xlu0 %v518, 28
      %v1397 = vpop.permute.xlu0 %1396
      %1398 = vrot.lane.b32.xlu0 %v519, 28
      %v1399 = vpop.permute.xlu0 %1398
      %1400 = vrot.lane.b32.xlu0 %v520, 28
      %v1401 = vpop.permute.xlu0 %1400
      %1402 = vrot.lane.b32.xlu0 %v521, 28
      %v1403 = vpop.permute.xlu0 %1402
      %1404 = vrot.lane.b32.xlu0 %v522, 28
      %v1405 = vpop.permute.xlu0 %1404
      %1406 = vrot.lane.b32.xlu0 %v523, 28
      %v1407 = vpop.permute.xlu0 %1406
      %1408 = vrot.lane.b32.xlu0 %v524, 28
      %v1409 = vpop.permute.xlu0 %1408
      %1410 = vrot.lane.b32.xlu0 %v525, 28
      %v1411 = vpop.permute.xlu0 %1410
      %1412 = vrot.lane.b32.xlu0 %v526, 28
      %v1413 = vpop.permute.xlu0 %1412
      %1414 = vrot.lane.b32.xlu0 %v527, 28
      %v1415 = vpop.permute.xlu0 %1414
      %1416 = vrot.lane.b32.xlu0 %v528, 28
      %v1417 = vpop.permute.xlu0 %1416
      %1418 = vrot.lane.b32.xlu0 %v529, 28
      %v1419 = vpop.permute.xlu0 %1418
      %1420 = vrot.lane.b32.xlu0 %v530, 28
      %v1421 = vpop.permute.xlu0 %1420
      %1422 = vrot.lane.b32.xlu0 %v531, 28
      %v1423 = vpop.permute.xlu0 %1422
      %1424 = vrot.lane.b32.xlu0 %v532, 28
      %v1425 = vpop.permute.xlu0 %1424
      %1426 = vrot.lane.b32.xlu0 %v533, 28
      %v1427 = vpop.permute.xlu0 %1426
      %1428 = vrot.lane.b32.xlu0 %v534, 28
      %v1429 = vpop.permute.xlu0 %1428
      %1430 = vrot.lane.b32.xlu0 %v535, 28
      %v1431 = vpop.permute.xlu0 %1430
      %1496 = vrot.lane.b32.xlu0 %v536, 32
      %v1497 = vpop.permute.xlu0 %1496
      %1498 = vrot.lane.b32.xlu0 %v537, 32
      %v1499 = vpop.permute.xlu0 %1498
      %1500 = vrot.lane.b32.xlu0 %v538, 32
      %v1501 = vpop.permute.xlu0 %1500
      %1502 = vrot.lane.b32.xlu0 %v539, 32
      %v1503 = vpop.permute.xlu0 %1502
      %1504 = vrot.lane.b32.xlu0 %v540, 32
      %v1505 = vpop.permute.xlu0 %1504
      %1506 = vrot.lane.b32.xlu0 %v541, 32
      %v1507 = vpop.permute.xlu0 %1506
      %1508 = vrot.lane.b32.xlu0 %v542, 32
      %v1509 = vpop.permute.xlu0 %1508
      %1510 = vrot.lane.b32.xlu0 %v543, 32
      %v1511 = vpop.permute.xlu0 %1510
      %1512 = vrot.lane.b32.xlu0 %v544, 32
      %v1513 = vpop.permute.xlu0 %1512
      %1514 = vrot.lane.b32.xlu0 %v545, 32
      %v1515 = vpop.permute.xlu0 %1514
      %1516 = vrot.lane.b32.xlu0 %v546, 32
      %v1517 = vpop.permute.xlu0 %1516
      %1518 = vrot.lane.b32.xlu0 %v547, 32
      %v1519 = vpop.permute.xlu0 %1518
      %1520 = vrot.lane.b32.xlu0 %v548, 32
      %v1521 = vpop.permute.xlu0 %1520
      %1522 = vrot.lane.b32.xlu0 %v549, 32
      %v1523 = vpop.permute.xlu0 %1522
      %1524 = vrot.lane.b32.xlu0 %v550, 32
      %v1525 = vpop.permute.xlu0 %1524
      %1526 = vrot.lane.b32.xlu0 %v551, 32
      %v1527 = vpop.permute.xlu0 %1526
      %1528 = vrot.lane.b32.xlu0 %v552, 32
      %v1529 = vpop.permute.xlu0 %1528
      %1530 = vrot.lane.b32.xlu0 %v553, 32
      %v1531 = vpop.permute.xlu0 %1530
      %1532 = vrot.lane.b32.xlu0 %v554, 32
      %v1533 = vpop.permute.xlu0 %1532
      %1534 = vrot.lane.b32.xlu0 %v555, 32
      %v1535 = vpop.permute.xlu0 %1534
      %1536 = vrot.lane.b32.xlu0 %v556, 32
      %v1537 = vpop.permute.xlu0 %1536
      %1538 = vrot.lane.b32.xlu0 %v557, 32
      %v1539 = vpop.permute.xlu0 %1538
      %1540 = vrot.lane.b32.xlu0 %v558, 32
      %v1541 = vpop.permute.xlu0 %1540
      %1542 = vrot.lane.b32.xlu0 %v559, 32
      %v1543 = vpop.permute.xlu0 %1542
      %1544 = vrot.lane.b32.xlu0 %v560, 32
      %v1545 = vpop.permute.xlu0 %1544
      %1546 = vrot.lane.b32.xlu0 %v561, 32
      %v1547 = vpop.permute.xlu0 %1546
      %1548 = vrot.lane.b32.xlu0 %v562, 32
      %v1549 = vpop.permute.xlu0 %1548
      %1550 = vrot.lane.b32.xlu0 %v563, 32
      %v1551 = vpop.permute.xlu0 %1550
      %1552 = vrot.lane.b32.xlu0 %v564, 32
      %v1553 = vpop.permute.xlu0 %1552
      %1554 = vrot.lane.b32.xlu0 %v565, 32
      %v1555 = vpop.permute.xlu0 %1554
      %1556 = vrot.lane.b32.xlu0 %v566, 32
      %v1557 = vpop.permute.xlu0 %1556
      %1558 = vrot.lane.b32.xlu0 %v567, 32
      %v1559 = vpop.permute.xlu0 %1558
      %vm1592 = vcmask 31744
      %v1593 = vsel %vm1592, %v278, %v601
      %v1594 = vsel %vm1592, %v279, %v603
      %v1595 = vsel %vm1592, %v280, %v605
      %v1596 = vsel %vm1592, %v281, %v607
      %v1597 = vsel %vm1592, %v282, %v609
      %v1598 = vsel %vm1592, %v283, %v611
      %v1599 = vsel %vm1592, %v284, %v613
      %v1600 = vsel %vm1592, %v285, %v615
      %v1601 = vsel %vm1592, %v286, %v617
      %v1602 = vsel %vm1592, %v287, %v619
      %v1603 = vsel %vm1592, %v288, %v621
      %v1604 = vsel %vm1592, %v289, %v623
      %v1605 = vsel %vm1592, %v290, %v625
      %v1606 = vsel %vm1592, %v291, %v627
      %v1607 = vsel %vm1592, %v292, %v629
      %v1608 = vsel %vm1592, %v293, %v631
      %v1609 = vsel %vm1592, %v294, %v633
      %v1610 = vsel %vm1592, %v295, %v635
      %v1611 = vsel %vm1592, %v296, %v637
      %v1612 = vsel %vm1592, %v297, %v639
      %v1613 = vsel %vm1592, %v298, %v641
      %v1614 = vsel %vm1592, %v299, %v643
      %v1615 = vsel %vm1592, %v300, %v645
      %v1616 = vsel %vm1592, %v301, %v647
      %v1617 = vsel %vm1592, %v302, %v649
      %v1618 = vsel %vm1592, %v303, %v651
      %v1619 = vsel %vm1592, %v304, %v653
      %v1620 = vsel %vm1592, %v305, %v655
      %v1621 = vsel %vm1592, %v306, %v657
      %v1622 = vsel %vm1592, %v307, %v659
      %v1623 = vsel %vm1592, %v308, %v661
      %v1624 = vsel %vm1592, %v309, %v663
      %vm1625 = vcmask 64512
      %v1626 = vsel %vm1625, %v1593, %v729
      %v1627 = vsel %vm1625, %v1594, %v731
      %v1628 = vsel %vm1625, %v1595, %v733
      %v1629 = vsel %vm1625, %v1596, %v735
      %v1630 = vsel %vm1625, %v1597, %v737
      %v1631 = vsel %vm1625, %v1598, %v739
      %v1632 = vsel %vm1625, %v1599, %v741
      %v1633 = vsel %vm1625, %v1600, %v743
      %v1634 = vsel %vm1625, %v1601, %v745
      %v1635 = vsel %vm1625, %v1602, %v747
      %v1636 = vsel %vm1625, %v1603, %v749
      %v1637 = vsel %vm1625, %v1604, %v751
      %v1638 = vsel %vm1625, %v1605, %v753
      %v1639 = vsel %vm1625, %v1606, %v755
      %v1640 = vsel %vm1625, %v1607, %v757
      %v1641 = vsel %vm1625, %v1608, %v759
      %v1642 = vsel %vm1625, %v1609, %v761
      %v1643 = vsel %vm1625, %v1610, %v763
      %v1644 = vsel %vm1625, %v1611, %v765
      %v1645 = vsel %vm1625, %v1612, %v767
      %v1646 = vsel %vm1625, %v1613, %v769
      %v1647 = vsel %vm1625, %v1614, %v771
      %v1648 = vsel %vm1625, %v1615, %v773
      %v1649 = vsel %vm1625, %v1616, %v775
      %v1650 = vsel %vm1625, %v1617, %v777
      %v1651 = vsel %vm1625, %v1618, %v779
      %v1652 = vsel %vm1625, %v1619, %v781
      %v1653 = vsel %vm1625, %v1620, %v783
      %v1654 = vsel %vm1625, %v1621, %v785
      %v1655 = vsel %vm1625, %v1622, %v787
      %v1656 = vsel %vm1625, %v1623, %v789
      %v1657 = vsel %vm1625, %v1624, %v791
      %vm1658 = vcmask 97280
      %v1659 = vsel %vm1658, %v1626, %v857
      %v1660 = vsel %vm1658, %v1627, %v859
      %v1661 = vsel %vm1658, %v1628, %v861
      %v1662 = vsel %vm1658, %v1629, %v863
      %v1663 = vsel %vm1658, %v1630, %v865
      %v1664 = vsel %vm1658, %v1631, %v867
      %v1665 = vsel %vm1658, %v1632, %v869
      %v1666 = vsel %vm1658, %v1633, %v871
      %v1667 = vsel %vm1658, %v1634, %v873
      %v1668 = vsel %vm1658, %v1635, %v875
      %v1669 = vsel %vm1658, %v1636, %v877
      %v1670 = vsel %vm1658, %v1637, %v879
      %v1671 = vsel %vm1658, %v1638, %v881
      %v1672 = vsel %vm1658, %v1639, %v883
      %v1673 = vsel %vm1658, %v1640, %v885
      %v1674 = vsel %vm1658, %v1641, %v887
      %v1675 = vsel %vm1658, %v1642, %v889
      %v1676 = vsel %vm1658, %v1643, %v891
      %v1677 = vsel %vm1658, %v1644, %v893
      %v1678 = vsel %vm1658, %v1645, %v895
      %v1679 = vsel %vm1658, %v1646, %v897
      %v1680 = vsel %vm1658, %v1647, %v899
      %v1681 = vsel %vm1658, %v1648, %v901
      %v1682 = vsel %vm1658, %v1649, %v903
      %v1683 = vsel %vm1658, %v1650, %v905
      %v1684 = vsel %vm1658, %v1651, %v907
      %v1685 = vsel %vm1658, %v1652, %v909
      %v1686 = vsel %vm1658, %v1653, %v911
      %v1687 = vsel %vm1658, %v1654, %v913
      %v1688 = vsel %vm1658, %v1655, %v915
      %v1689 = vsel %vm1658, %v1656, %v917
      %v1690 = vsel %vm1658, %v1657, %v919
      %vm1691 = vcmask 130048
      %v1692 = vsel %vm1691, %v1659, %v985
      %v1693 = vsel %vm1691, %v1660, %v987
      %v1694 = vsel %vm1691, %v1661, %v989
      %v1695 = vsel %vm1691, %v1662, %v991
      %v1696 = vsel %vm1691, %v1663, %v993
      %v1697 = vsel %vm1691, %v1664, %v995
      %v1698 = vsel %vm1691, %v1665, %v997
      %v1699 = vsel %vm1691, %v1666, %v999
      %v1700 = vsel %vm1691, %v1667, %v1001
      %v1701 = vsel %vm1691, %v1668, %v1003
      %v1702 = vsel %vm1691, %v1669, %v1005
      %v1703 = vsel %vm1691, %v1670, %v1007
      %v1704 = vsel %vm1691, %v1671, %v1009
      %v1705 = vsel %vm1691, %v1672, %v1011
      %v1706 = vsel %vm1691, %v1673, %v1013
      %v1707 = vsel %vm1691, %v1674, %v1015
      %v1708 = vsel %vm1691, %v1675, %v1017
      %v1709 = vsel %vm1691, %v1676, %v1019
      %v1710 = vsel %vm1691, %v1677, %v1021
      %v1711 = vsel %vm1691, %v1678, %v1023
      %v1712 = vsel %vm1691, %v1679, %v1025
      %v1713 = vsel %vm1691, %v1680, %v1027
      %v1714 = vsel %vm1691, %v1681, %v1029
      %v1715 = vsel %vm1691, %v1682, %v1031
      %v1716 = vsel %vm1691, %v1683, %v1033
      %v1717 = vsel %vm1691, %v1684, %v1035
      %v1718 = vsel %vm1691, %v1685, %v1037
      %v1719 = vsel %vm1691, %v1686, %v1039
      %v1720 = vsel %vm1691, %v1687, %v1041
      %v1721 = vsel %vm1691, %v1688, %v1043
      %v1722 = vsel %vm1691, %v1689, %v1045
      %v1723 = vsel %vm1691, %v1690, %v1047
      %vm1724 = vcmask 162816
      %v1725 = vsel %vm1724, %v1692, %v1113
      %v1726 = vsel %vm1724, %v1693, %v1115
      %v1727 = vsel %vm1724, %v1694, %v1117
      %v1728 = vsel %vm1724, %v1695, %v1119
      %v1729 = vsel %vm1724, %v1696, %v1121
      %v1730 = vsel %vm1724, %v1697, %v1123
      %v1731 = vsel %vm1724, %v1698, %v1125
      %v1732 = vsel %vm1724, %v1699, %v1127
      %v1733 = vsel %vm1724, %v1700, %v1129
      %v1734 = vsel %vm1724, %v1701, %v1131
      %v1735 = vsel %vm1724, %v1702, %v1133
      %v1736 = vsel %vm1724, %v1703, %v1135
      %v1737 = vsel %vm1724, %v1704, %v1137
      %v1738 = vsel %vm1724, %v1705, %v1139
      %v1739 = vsel %vm1724, %v1706, %v1141
      %v1740 = vsel %vm1724, %v1707, %v1143
      %v1741 = vsel %vm1724, %v1708, %v1145
      %v1742 = vsel %vm1724, %v1709, %v1147
      %v1743 = vsel %vm1724, %v1710, %v1149
      %v1744 = vsel %vm1724, %v1711, %v1151
      %v1745 = vsel %vm1724, %v1712, %v1153
      %v1746 = vsel %vm1724, %v1713, %v1155
      %v1747 = vsel %vm1724, %v1714, %v1157
      %v1748 = vsel %vm1724, %v1715, %v1159
      %v1749 = vsel %vm1724, %v1716, %v1161
      %v1750 = vsel %vm1724, %v1717, %v1163
      %v1751 = vsel %vm1724, %v1718, %v1165
      %v1752 = vsel %vm1724, %v1719, %v1167
      %v1753 = vsel %vm1724, %v1720, %v1169
      %v1754 = vsel %vm1724, %v1721, %v1171
      %v1755 = vsel %vm1724, %v1722, %v1173
      %v1756 = vsel %vm1724, %v1723, %v1175
      %vm1757 = vcmask 195584
      %v1758 = vsel %vm1757, %v1725, %v1241
      %v1759 = vsel %vm1757, %v1726, %v1243
      %v1760 = vsel %vm1757, %v1727, %v1245
      %v1761 = vsel %vm1757, %v1728, %v1247
      %v1762 = vsel %vm1757, %v1729, %v1249
      %v1763 = vsel %vm1757, %v1730, %v1251
      %v1764 = vsel %vm1757, %v1731, %v1253
      %v1765 = vsel %vm1757, %v1732, %v1255
      %v1766 = vsel %vm1757, %v1733, %v1257
      %v1767 = vsel %vm1757, %v1734, %v1259
      %v1768 = vsel %vm1757, %v1735, %v1261
      %v1769 = vsel %vm1757, %v1736, %v1263
      %v1770 = vsel %vm1757, %v1737, %v1265
      %v1771 = vsel %vm1757, %v1738, %v1267
      %v1772 = vsel %vm1757, %v1739, %v1269
      %v1773 = vsel %vm1757, %v1740, %v1271
      %v1774 = vsel %vm1757, %v1741, %v1273
      %v1775 = vsel %vm1757, %v1742, %v1275
      %v1776 = vsel %vm1757, %v1743, %v1277
      %v1777 = vsel %vm1757, %v1744, %v1279
      %v1778 = vsel %vm1757, %v1745, %v1281
      %v1779 = vsel %vm1757, %v1746, %v1283
      %v1780 = vsel %vm1757, %v1747, %v1285
      %v1781 = vsel %vm1757, %v1748, %v1287
      %v1782 = vsel %vm1757, %v1749, %v1289
      %v1783 = vsel %vm1757, %v1750, %v1291
      %v1784 = vsel %vm1757, %v1751, %v1293
      %v1785 = vsel %vm1757, %v1752, %v1295
      %v1786 = vsel %vm1757, %v1753, %v1297
      %v1787 = vsel %vm1757, %v1754, %v1299
      %v1788 = vsel %vm1757, %v1755, %v1301
      %v1789 = vsel %vm1757, %v1756, %v1303
      %vm1790 = vcmask 228352
      %v1791 = vsel %vm1790, %v1758, %v1369
      %v1792 = vsel %vm1790, %v1759, %v1371
      %v1793 = vsel %vm1790, %v1760, %v1373
      %v1794 = vsel %vm1790, %v1761, %v1375
      %v1795 = vsel %vm1790, %v1762, %v1377
      %v1796 = vsel %vm1790, %v1763, %v1379
      %v1797 = vsel %vm1790, %v1764, %v1381
      %v1798 = vsel %vm1790, %v1765, %v1383
      %v1799 = vsel %vm1790, %v1766, %v1385
      %v1800 = vsel %vm1790, %v1767, %v1387
      %v1801 = vsel %vm1790, %v1768, %v1389
      %v1802 = vsel %vm1790, %v1769, %v1391
      %v1803 = vsel %vm1790, %v1770, %v1393
      %v1804 = vsel %vm1790, %v1771, %v1395
      %v1805 = vsel %vm1790, %v1772, %v1397
      %v1806 = vsel %vm1790, %v1773, %v1399
      %v1807 = vsel %vm1790, %v1774, %v1401
      %v1808 = vsel %vm1790, %v1775, %v1403
      %v1809 = vsel %vm1790, %v1776, %v1405
      %v1810 = vsel %vm1790, %v1777, %v1407
      %v1811 = vsel %vm1790, %v1778, %v1409
      %v1812 = vsel %vm1790, %v1779, %v1411
      %v1813 = vsel %vm1790, %v1780, %v1413
      %v1814 = vsel %vm1790, %v1781, %v1415
      %v1815 = vsel %vm1790, %v1782, %v1417
      %v1816 = vsel %vm1790, %v1783, %v1419
      %v1817 = vsel %vm1790, %v1784, %v1421
      %v1818 = vsel %vm1790, %v1785, %v1423
      %v1819 = vsel %vm1790, %v1786, %v1425
      %v1820 = vsel %vm1790, %v1787, %v1427
      %v1821 = vsel %vm1790, %v1788, %v1429
      %v1822 = vsel %vm1790, %v1789, %v1431
      %vm1823 = vcmask 261120
      %v1824 = vsel %vm1823, %v1791, %v1497
      %v1825 = vsel %vm1823, %v1792, %v1499
      %v1826 = vsel %vm1823, %v1793, %v1501
      %v1827 = vsel %vm1823, %v1794, %v1503
      %v1828 = vsel %vm1823, %v1795, %v1505
      %v1829 = vsel %vm1823, %v1796, %v1507
      %v1830 = vsel %vm1823, %v1797, %v1509
      %v1831 = vsel %vm1823, %v1798, %v1511
      %v1832 = vsel %vm1823, %v1799, %v1513
      %v1833 = vsel %vm1823, %v1800, %v1515
      %v1834 = vsel %vm1823, %v1801, %v1517
      %v1835 = vsel %vm1823, %v1802, %v1519
      %v1836 = vsel %vm1823, %v1803, %v1521
      %v1837 = vsel %vm1823, %v1804, %v1523
      %v1838 = vsel %vm1823, %v1805, %v1525
      %v1839 = vsel %vm1823, %v1806, %v1527
      %v1840 = vsel %vm1823, %v1807, %v1529
      %v1841 = vsel %vm1823, %v1808, %v1531
      %v1842 = vsel %vm1823, %v1809, %v1533
      %v1843 = vsel %vm1823, %v1810, %v1535
      %v1844 = vsel %vm1823, %v1811, %v1537
      %v1845 = vsel %vm1823, %v1812, %v1539
      %v1846 = vsel %vm1823, %v1813, %v1541
      %v1847 = vsel %vm1823, %v1814, %v1543
      %v1848 = vsel %vm1823, %v1815, %v1545
      %v1849 = vsel %vm1823, %v1816, %v1547
      %v1850 = vsel %vm1823, %v1817, %v1549
      %v1851 = vsel %vm1823, %v1818, %v1551
      %v1852 = vsel %vm1823, %v1819, %v1553
      %v1853 = vsel %vm1823, %v1820, %v1555
      %v1854 = vsel %vm1823, %v1821, %v1557
      %v1855 = vsel %vm1823, %v1822, %v1559
      %v1856 = vpack.c.bf16 %v1825, %v1824
      %v1857 = vpack.c.bf16 %v1827, %v1826
      %v1858 = vpack.c.bf16 %v1829, %v1828
      %v1859 = vpack.c.bf16 %v1831, %v1830
      %v1860 = vpack.c.bf16 %v1833, %v1832
      %v1861 = vpack.c.bf16 %v1835, %v1834
      %v1862 = vpack.c.bf16 %v1837, %v1836
      %v1863 = vpack.c.bf16 %v1839, %v1838
      %v1864 = vpack.c.bf16 %v1841, %v1840
      %v1865 = vpack.c.bf16 %v1843, %v1842
      %v1866 = vpack.c.bf16 %v1845, %v1844
      %v1867 = vpack.c.bf16 %v1847, %v1846
      %v1868 = vpack.c.bf16 %v1849, %v1848
      %v1869 = vpack.c.bf16 %v1851, %v1850
      %v1870 = vpack.c.bf16 %v1853, %v1852
      %v1871 = vpack.c.bf16 %v1855, %v1854
      %v1872 = vld [vmem:[%s1] sm:$0xf]
      %v1873 = vld [vmem:[%s1 + $0x4] sm:$0xf]
      %v1874 = vld [vmem:[%s1 + $0x8] sm:$0xf]
      %v1875 = vld [vmem:[%s1 + $0xc] sm:$0xf]
      %v1876 = vld [vmem:[%s1 + $0x10] sm:$0x3]
      %v1877 = vld [vmem:[%s2] sm:$0x1]
      %v1879 = vlaneseq
      %v1880 = vshrl.u32 %v1879, 7
      %v1881 = vsub.s32 0, %v1880
      %v1882 = vrot.slane %v1877, %v1881
      %v1889 = vunpack.c.l.b16 %v1872
      %v1890 = vunpack.c.l.b16 %v1873
      %v1891 = vunpack.c.l.b16 %v1874
      %v1892 = vunpack.c.l.b16 %v1875
      %v1893 = vunpack.c.l.b16 %v1876
      %v1894 = vpack.c.b16 %v1890, %v1889
      %v1895 = vpack.c.b16 %v1892, %v1891
      %v1896 = vpack.c.b16 %v1893, %v1893
      %vm1899 = vcmask 293888
      %v1901 = vsel %vm1899, %v1856, 0
      %v1904 = vsel %vm1899, %v1857, 0
      %v1907 = vsel %vm1899, %v1858, 0
      %v1910 = vsel %vm1899, %v1859, 0
      %v1913 = vsel %vm1899, %v1860, 0
      %v1916 = vsel %vm1899, %v1861, 0
      %v1919 = vsel %vm1899, %v1862, 0
      %v1922 = vsel %vm1899, %v1863, 0
      %v1925 = vsel %vm1899, %v1864, 0
      %v1928 = vsel %vm1899, %v1865, 0
      %v1931 = vsel %vm1899, %v1866, 0
      %v1934 = vsel %vm1899, %v1867, 0
      %v1937 = vsel %vm1899, %v1868, 0
      %v1940 = vsel %vm1899, %v1869, 0
      %v1943 = vsel %vm1899, %v1870, 0
      %v1946 = vsel %vm1899, %v1871, 0
      %vm1948 = vcmask 1041408
      %v1950 = vsel %vm1948, %v1896, 0
      %1952 = vmatprep.subr.bf16.mxu0 0
      %1953 = vmatpush1.bf16.msra.mxu0 %v1894
      %1954 = vmatprep.subr.bf16.mxu0 0
      %1955 = vmatpush1.bf16.msra.mxu0 %v1895
      %1956 = vmatprep.subr.bf16.mxu0 0
      %1957 = vmatpush1.bf16.msra.mxu0 %v1950
      %1958 = vmatprep.subr.bf16.mxu0 0
      %1959 = vmatpush1.bf16.msra.mxu0 0
      %1960 = vmatprep.subr.bf16.mxu0 0
      %1961 = vmatpush1.bf16.msra.mxu0 0
      %1962 = vmatprep.subr.bf16.mxu0 0
      %1963 = vmatpush1.bf16.msra.mxu0 0
      %1964 = vmatprep.subr.bf16.mxu0 0
      %1965 = vmatpush1.bf16.msra.mxu0 0
      %1966 = vmatprep.subr.bf16.mxu0 0
      %1967 = vmatpush1.bf16.msra.mxu0 0
      %1968 = vmatprep.subr.bf16.mxu0 0
      %1969 = vmatpush1.bf16.msra.mxu0 0
      %1970 = vmatprep.subr.bf16.mxu0 0
      %1971 = vmatpush1.bf16.msra.mxu0 0
      %1972 = vmatprep.subr.bf16.mxu0 0
      %1973 = vmatpush1.bf16.msra.mxu0 0
      %1974 = vmatprep.subr.bf16.mxu0 0
      %1975 = vmatpush1.bf16.msra.mxu0 0
      %1976 = vmatprep.subr.bf16.mxu0 0
      %1977 = vmatpush1.bf16.msra.mxu0 0
      %1978 = vmatprep.subr.bf16.mxu0 0
      %1979 = vmatpush1.bf16.msra.mxu0 0
      %1980 = vmatprep.subr.bf16.mxu0 0
      %1981 = vmatpush1.bf16.msra.mxu0 0
      %1982 = vmatprep.subr.bf16.mxu0 0
      %1983 = vmatpush1.bf16.msra.mxu0 0
      %1984 = vmatprep.mubr.bf16.mxu0 0
      %1985 = vmatmul.mubr.bf16.gmra.mrb[0].mxu0 %v1901
      %v1986 = vpop.f32.mrb[0].mxu0
      %v1987 = vadd.f32 %v1882, %v1986
      %v1988 = vpop.f32.mrb[0].mxu0
      %v1989 = vpop.f32.mrb[0].mxu0
      %v1990 = vadd.f32 %v1882, %v1989
      %v1991 = vpop.f32.mrb[0].mxu0
      %1992 = vmatprep.mubr.bf16.mxu0 0
      %1993 = vmatmul.mubr.bf16.gmra.mrb[0].mxu0 %v1904
      %v1994 = vpop.f32.mrb[0].mxu0
      %v1995 = vadd.f32 %v1882, %v1994
      %v1996 = vpop.f32.mrb[0].mxu0
      %v1997 = vpop.f32.mrb[0].mxu0
      %v1998 = vadd.f32 %v1882, %v1997
      %v1999 = vpop.f32.mrb[0].mxu0
      %2000 = vmatprep.mubr.bf16.mxu0 0
      %2001 = vmatmul.mubr.bf16.gmra.mrb[0].mxu0 %v1907
      %v2002 = vpop.f32.mrb[0].mxu0
      %v2003 = vadd.f32 %v1882, %v2002
      %v2004 = vpop.f32.mrb[0].mxu0
      %v2005 = vpop.f32.mrb[0].mxu0
      %v2006 = vadd.f32 %v1882, %v2005
      %v2007 = vpop.f32.mrb[0].mxu0
      %2008 = vmatprep.mubr.bf16.mxu0 0
      %2009 = vmatmul.mubr.bf16.gmra.mrb[0].mxu0 %v1910
      %v2010 = vpop.f32.mrb[0].mxu0
      %v2011 = vadd.f32 %v1882, %v2010
      %v2012 = vpop.f32.mrb[0].mxu0
      %v2013 = vpop.f32.mrb[0].mxu0
      %v2014 = vadd.f32 %v1882, %v2013
      %v2015 = vpop.f32.mrb[0].mxu0
      %2016 = vmatprep.mubr.bf16.mxu0 0
      %2017 = vmatmul.mubr.bf16.gmra.mrb[0].mxu0 %v1913
      %v2018 = vpop.f32.mrb[0].mxu0
      %v2019 = vadd.f32 %v1882, %v2018
      %v2020 = vpop.f32.mrb[0].mxu0
      %v2021 = vpop.f32.mrb[0].mxu0
      %v2022 = vadd.f32 %v1882, %v2021
      %v2023 = vpop.f32.mrb[0].mxu0
      %2024 = vmatprep.mubr.bf16.mxu0 0
      %2025 = vmatmul.mubr.bf16.gmra.mrb[0].mxu0 %v1916
      %v2026 = vpop.f32.mrb[0].mxu0
      %v2027 = vadd.f32 %v1882, %v2026
      %v2028 = vpop.f32.mrb[0].mxu0
      %v2029 = vpop.f32.mrb[0].mxu0
      %v2030 = vadd.f32 %v1882, %v2029
      %v2031 = vpop.f32.mrb[0].mxu0
      %2032 = vmatprep.mubr.bf16.mxu0 0
      %2033 = vmatmul.mubr.bf16.gmra.mrb[0].mxu0 %v1919
      %v2034 = vpop.f32.mrb[0].mxu0
      %v2035 = vadd.f32 %v1882, %v2034
      %v2036 = vpop.f32.mrb[0].mxu0
      %v2037 = vpop.f32.mrb[0].mxu0
      %v2038 = vadd.f32 %v1882, %v2037
      %v2039 = vpop.f32.mrb[0].mxu0
      %2040 = vmatprep.mubr.bf16.mxu0 0
      %2041 = vmatmul.mubr.bf16.gmra.mrb[0].mxu0 %v1922
      %v2042 = vpop.f32.mrb[0].mxu0
      %v2043 = vadd.f32 %v1882, %v2042
      %v2044 = vpop.f32.mrb[0].mxu0
      %v2045 = vpop.f32.mrb[0].mxu0
      %v2046 = vadd.f32 %v1882, %v2045
      %v2047 = vpop.f32.mrb[0].mxu0
      %2048 = vmatprep.mubr.bf16.mxu0 0
      %2049 = vmatmul.mubr.bf16.gmra.mrb[0].mxu0 %v1925
      %v2050 = vpop.f32.mrb[0].mxu0
      %v2051 = vadd.f32 %v1882, %v2050
      %v2052 = vpop.f32.mrb[0].mxu0
      %v2053 = vpop.f32.mrb[0].mxu0
      %v2054 = vadd.f32 %v1882, %v2053
      %v2055 = vpop.f32.mrb[0].mxu0
      %2056 = vmatprep.mubr.bf16.mxu0 0
      %2057 = vmatmul.mubr.bf16.gmra.mrb[0].mxu0 %v1928
      %v2058 = vpop.f32.mrb[0].mxu0
      %v2059 = vadd.f32 %v1882, %v2058
      %v2060 = vpop.f32.mrb[0].mxu0
      %v2061 = vpop.f32.mrb[0].mxu0
      %v2062 = vadd.f32 %v1882, %v2061
      %v2063 = vpop.f32.mrb[0].mxu0
      %2064 = vmatprep.mubr.bf16.mxu0 0
      %2065 = vmatmul.mubr.bf16.gmra.mrb[0].mxu0 %v1931
      %v2066 = vpop.f32.mrb[0].mxu0
      %v2067 = vadd.f32 %v1882, %v2066
      %v2068 = vpop.f32.mrb[0].mxu0
      %v2069 = vpop.f32.mrb[0].mxu0
      %v2070 = vadd.f32 %v1882, %v2069
      %v2071 = vpop.f32.mrb[0].mxu0
      %2072 = vmatprep.mubr.bf16.mxu0 0
      %2073 = vmatmul.mubr.bf16.gmra.mrb[0].mxu0 %v1934
      %v2074 = vpop.f32.mrb[0].mxu0
      %v2075 = vadd.f32 %v1882, %v2074
      %v2076 = vpop.f32.mrb[0].mxu0
      %v2077 = vpop.f32.mrb[0].mxu0
      %v2078 = vadd.f32 %v1882, %v2077
      %v2079 = vpop.f32.mrb[0].mxu0
      %2080 = vmatprep.mubr.bf16.mxu0 0
      %2081 = vmatmul.mubr.bf16.gmra.mrb[0].mxu0 %v1937
      %v2082 = vpop.f32.mrb[0].mxu0
      %v2083 = vadd.f32 %v1882, %v2082
      %v2084 = vpop.f32.mrb[0].mxu0
      %v2085 = vpop.f32.mrb[0].mxu0
      %v2086 = vadd.f32 %v1882, %v2085
      %v2087 = vpop.f32.mrb[0].mxu0
      %2088 = vmatprep.mubr.bf16.mxu0 0
      %2089 = vmatmul.mubr.bf16.gmra.mrb[0].mxu0 %v1940
      %v2090 = vpop.f32.mrb[0].mxu0
      %v2091 = vadd.f32 %v1882, %v2090
      %v2092 = vpop.f32.mrb[0].mxu0
      %v2093 = vpop.f32.mrb[0].mxu0
      %v2094 = vadd.f32 %v1882, %v2093
      %v2095 = vpop.f32.mrb[0].mxu0
      %2096 = vmatprep.mubr.bf16.mxu0 0
      %2097 = vmatmul.mubr.bf16.gmra.mrb[0].mxu0 %v1943
      %v2098 = vpop.f32.mrb[0].mxu0
      %v2099 = vadd.f32 %v1882, %v2098
      %v2100 = vpop.f32.mrb[0].mxu0
      %v2101 = vpop.f32.mrb[0].mxu0
      %v2102 = vadd.f32 %v1882, %v2101
      %v2103 = vpop.f32.mrb[0].mxu0
      %2104 = vmatprep.mubr.bf16.mxu0 0
      %2105 = vmatmul.mubr.bf16.gmra.mrb[0].mxu0 %v1946
      %v2106 = vpop.f32.mrb[0].mxu0
      %v2107 = vadd.f32 %v1882, %v2106
      %v2108 = vpop.f32.mrb[0].mxu0
      %v2109 = vpop.f32.mrb[0].mxu0
      %v2110 = vadd.f32 %v1882, %v2109
      %v2111 = vpop.f32.mrb[0].mxu0
      %2112 = vdwg.mxu0
      %v2113 = vadd.f32 %v1987, %v1990
      %v2114 = vadd.f32 %v2113, %v1995
      %v2115 = vadd.f32 %v2114, %v1998
      %v2116 = vadd.f32 %v2115, %v2003
      %v2117 = vadd.f32 %v2116, %v2006
      %v2118 = vadd.f32 %v2117, %v2011
      %v2119 = vadd.f32 %v2118, %v2014
      %v2120 = vadd.f32 %v2119, %v2019
      %v2121 = vadd.f32 %v2120, %v2022
      %v2122 = vadd.f32 %v2121, %v2027
      %v2123 = vadd.f32 %v2122, %v2030
      %v2124 = vadd.f32 %v2123, %v2035
      %v2125 = vadd.f32 %v2124, %v2038
      %v2126 = vadd.f32 %v2125, %v2043
      %v2127 = vadd.f32 %v2126, %v2046
      %v2128 = vadd.f32 %v2127, %v2051
      %v2129 = vadd.f32 %v2128, %v2054
      %v2130 = vadd.f32 %v2129, %v2059
      %v2131 = vadd.f32 %v2130, %v2062
      %v2132 = vadd.f32 %v2131, %v2067
      %v2133 = vadd.f32 %v2132, %v2070
      %v2134 = vadd.f32 %v2133, %v2075
      %v2135 = vadd.f32 %v2134, %v2078
      %v2136 = vadd.f32 %v2135, %v2083
      %v2137 = vadd.f32 %v2136, %v2086
      %v2138 = vadd.f32 %v2137, %v2091
      %v2139 = vadd.f32 %v2138, %v2094
      %v2140 = vadd.f32 %v2139, %v2099
      %v2141 = vadd.f32 %v2140, %v2102
      %v2142 = vadd.f32 %v2141, %v2107
      %v2143 = vadd.f32 %v2142, %v2110
      %v2144 = vrot.slane %v2143, 4
      %v2145 = vadd.f32 %v2143, %v2144
      %v2146 = vrot.slane %v2145, 2
      %v2147 = vadd.f32 %v2145, %v2146
      %v2148 = vrot.slane %v2147, 1
      %v2149 = vadd.f32 %v2147, %v2148
      %v2150 = vmul.f32 %v2149, 0.00390625
      %v2151 = vsub.f32 %v1987, %v2150
      %v2152 = vsub.f32 %v1990, %v2150
      %v2153 = vsub.f32 %v1995, %v2150
      %v2154 = vsub.f32 %v1998, %v2150
      %v2155 = vsub.f32 %v2003, %v2150
      %v2156 = vsub.f32 %v2006, %v2150
      %v2157 = vsub.f32 %v2011, %v2150
      %v2158 = vsub.f32 %v2014, %v2150
      %v2159 = vsub.f32 %v2019, %v2150
      %v2160 = vsub.f32 %v2022, %v2150
      %v2161 = vsub.f32 %v2027, %v2150
      %v2162 = vsub.f32 %v2030, %v2150
      %v2163 = vsub.f32 %v2035, %v2150
      %v2164 = vsub.f32 %v2038, %v2150
      %v2165 = vsub.f32 %v2043, %v2150
      %v2166 = vsub.f32 %v2046, %v2150
      %v2167 = vsub.f32 %v2051, %v2150
      %v2168 = vsub.f32 %v2054, %v2150
      %v2169 = vsub.f32 %v2059, %v2150
      %v2170 = vsub.f32 %v2062, %v2150
      %v2171 = vsub.f32 %v2067, %v2150
      %v2172 = vsub.f32 %v2070, %v2150
      %v2173 = vsub.f32 %v2075, %v2150
      %v2174 = vsub.f32 %v2078, %v2150
      %v2175 = vsub.f32 %v2083, %v2150
      %v2176 = vsub.f32 %v2086, %v2150
      %v2177 = vsub.f32 %v2091, %v2150
      %v2178 = vsub.f32 %v2094, %v2150
      %v2179 = vsub.f32 %v2099, %v2150
      %v2180 = vsub.f32 %v2102, %v2150
      %v2181 = vsub.f32 %v2107, %v2150
      %v2182 = vsub.f32 %v2110, %v2150
      %2183 = vst [vmem:[%s273] sm:$0x1] %v2150
      %v2184 = vmul.f32 %v2151, %v2151
      %v2185 = vmul.f32 %v2152, %v2152
      %v2186 = vmul.f32 %v2153, %v2153
      %v2187 = vmul.f32 %v2154, %v2154
      %v2188 = vmul.f32 %v2155, %v2155
      %v2189 = vmul.f32 %v2156, %v2156
      %v2190 = vmul.f32 %v2157, %v2157
      %v2191 = vmul.f32 %v2158, %v2158
      %v2192 = vmul.f32 %v2159, %v2159
      %v2193 = vmul.f32 %v2160, %v2160
      %v2194 = vmul.f32 %v2161, %v2161
      %v2195 = vmul.f32 %v2162, %v2162
      %v2196 = vmul.f32 %v2163, %v2163
      %v2197 = vmul.f32 %v2164, %v2164
      %v2198 = vmul.f32 %v2165, %v2165
      %v2199 = vmul.f32 %v2166, %v2166
      %v2200 = vmul.f32 %v2167, %v2167
      %v2201 = vmul.f32 %v2168, %v2168
      %v2202 = vmul.f32 %v2169, %v2169
      %v2203 = vmul.f32 %v2170, %v2170
      %v2204 = vmul.f32 %v2171, %v2171
      %v2205 = vmul.f32 %v2172, %v2172
      %v2206 = vmul.f32 %v2173, %v2173
      %v2207 = vmul.f32 %v2174, %v2174
      %v2208 = vmul.f32 %v2175, %v2175
      %v2209 = vmul.f32 %v2176, %v2176
      %v2210 = vmul.f32 %v2177, %v2177
      %v2211 = vmul.f32 %v2178, %v2178
      %v2212 = vmul.f32 %v2179, %v2179
      %v2213 = vmul.f32 %v2180, %v2180
      %v2214 = vmul.f32 %v2181, %v2181
      %v2215 = vmul.f32 %v2182, %v2182
      %v2216 = vadd.f32 %v2184, %v2185
      %v2217 = vadd.f32 %v2216, %v2186
      %v2218 = vadd.f32 %v2217, %v2187
      %v2219 = vadd.f32 %v2218, %v2188
      %v2220 = vadd.f32 %v2219, %v2189
      %v2221 = vadd.f32 %v2220, %v2190
      %v2222 = vadd.f32 %v2221, %v2191
      %v2223 = vadd.f32 %v2222, %v2192
      %v2224 = vadd.f32 %v2223, %v2193
      %v2225 = vadd.f32 %v2224, %v2194
      %v2226 = vadd.f32 %v2225, %v2195
      %v2227 = vadd.f32 %v2226, %v2196
      %v2228 = vadd.f32 %v2227, %v2197
      %v2229 = vadd.f32 %v2228, %v2198
      %v2230 = vadd.f32 %v2229, %v2199
      %v2231 = vadd.f32 %v2230, %v2200
      %v2232 = vadd.f32 %v2231, %v2201
      %v2233 = vadd.f32 %v2232, %v2202
      %v2234 = vadd.f32 %v2233, %v2203
      %v2235 = vadd.f32 %v2234, %v2204
      %v2236 = vadd.f32 %v2235, %v2205
      %v2237 = vadd.f32 %v2236, %v2206
      %v2238 = vadd.f32 %v2237, %v2207
      %v2239 = vadd.f32 %v2238, %v2208
      %v2240 = vadd.f32 %v2239, %v2209
      %v2241 = vadd.f32 %v2240, %v2210
      %v2242 = vadd.f32 %v2241, %v2211
      %v2243 = vadd.f32 %v2242, %v2212
      %v2244 = vadd.f32 %v2243, %v2213
      %v2245 = vadd.f32 %v2244, %v2214
      %v2246 = vadd.f32 %v2245, %v2215
      %v2247 = vrot.slane %v2246, 4
      %v2248 = vadd.f32 %v2246, %v2247
      %v2249 = vrot.slane %v2248, 2
      %v2250 = vadd.f32 %v2248, %v2249
      %v2251 = vrot.slane %v2250, 1
      %v2252 = vadd.f32 %v2250, %v2251
      %2253 = vst [vmem:[%s276] sm:$0x1] %v2252
      %2254 = vst [vmem:[#allocation2] sm:$0xff] %v1987
      %2255 = vst [vmem:[#allocation2 + $0x8] sm:$0xff] %v1990
      %2256 = vst [vmem:[#allocation2 + $0x10] sm:$0xff] %v1995
      %2257 = vst [vmem:[#allocation2 + $0x18] sm:$0xff] %v1998
      %2258 = vst [vmem:[#allocation2 + $0x20] sm:$0xff] %v2003
      %2259 = vst [vmem:[#allocation2 + $0x28] sm:$0xff] %v2006
      %2260 = vst [vmem:[#allocation2 + $0x30] sm:$0xff] %v2011
      %2261 = vst [vmem:[#allocation2 + $0x38] sm:$0xff] %v2014
      %2262 = vst [vmem:[#allocation2 + $0x40] sm:$0xff] %v2019
      %2263 = vst [vmem:[#allocation2 + $0x48] sm:$0xff] %v2022
      %2264 = vst [vmem:[#allocation2 + $0x50] sm:$0xff] %v2027
      %2265 = vst [vmem:[#allocation2 + $0x58] sm:$0xff] %v2030
      %2266 = vst [vmem:[#allocation2 + $0x60] sm:$0xff] %v2035
      %2267 = vst [vmem:[#allocation2 + $0x68] sm:$0xff] %v2038
      %2268 = vst [vmem:[#allocation2 + $0x70] sm:$0xff] %v2043
      %2269 = vst [vmem:[#allocation2 + $0x78] sm:$0xff] %v2046
      %2270 = vst [vmem:[#allocation2 + $0x80] sm:$0xff] %v2051
      %2271 = vst [vmem:[#allocation2 + $0x88] sm:$0xff] %v2054
      %2272 = vst [vmem:[#allocation2 + $0x90] sm:$0xff] %v2059
      %2273 = vst [vmem:[#allocation2 + $0x98] sm:$0xff] %v2062
      %2274 = vst [vmem:[#allocation2 + $0xa0] sm:$0xff] %v2067
      %2275 = vst [vmem:[#allocation2 + $0xa8] sm:$0xff] %v2070
      %2276 = vst [vmem:[#allocation2 + $0xb0] sm:$0xff] %v2075
      %2277 = vst [vmem:[#allocation2 + $0xb8] sm:$0xff] %v2078
      %2278 = vst [vmem:[#allocation2 + $0xc0] sm:$0xff] %v2083
      %2279 = vst [vmem:[#allocation2 + $0xc8] sm:$0xff] %v2086
      %2280 = vst [vmem:[#allocation2 + $0xd0] sm:$0xff] %v2091
      %2281 = vst [vmem:[#allocation2 + $0xd8] sm:$0xff] %v2094
      %2282 = vst [vmem:[#allocation2 + $0xe0] sm:$0xff] %v2099
      %2283 = vst [vmem:[#allocation2 + $0xe8] sm:$0xff] %v2102
      %2284 = vst [vmem:[#allocation2 + $0xf0] sm:$0xff] %v2107
      %2285 = vst [vmem:[#allocation2 + $0xf8] sm:$0xff] %v2110
      %v2286 = vld [vmem:[#allocation2] ss:$2 sm:$0xff]
      %s2287 = scalar_lea.vmem [#allocation2], 16
      %v2288 = vld [vmem:[%s2287] ss:$2 sm:$0xff]
      %s2289 = scalar_lea.vmem [#allocation2], 32
      %v2290 = vld [vmem:[%s2289] ss:$2 sm:$0xff]
      %s2291 = scalar_lea.vmem [#allocation2], 48
      %v2292 = vld [vmem:[%s2291] ss:$2 sm:$0xff]
      %s2293 = scalar_lea.vmem [#allocation2], 64
      %v2294 = vld [vmem:[%s2293] ss:$2 sm:$0xff]
      %s2295 = scalar_lea.vmem [#allocation2], 80
      %v2296 = vld [vmem:[%s2295] ss:$2 sm:$0xff]
      %s2297 = scalar_lea.vmem [#allocation2], 96
      %v2298 = vld [vmem:[%s2297] ss:$2 sm:$0xff]
      %s2299 = scalar_lea.vmem [#allocation2], 112
      %v2300 = vld [vmem:[%s2299] ss:$2 sm:$0xff]
      %s2301 = scalar_lea.vmem [#allocation2], 128
      %v2302 = vld [vmem:[%s2301] ss:$2 sm:$0xff]
      %s2303 = scalar_lea.vmem [#allocation2], 144
      %v2304 = vld [vmem:[%s2303] ss:$2 sm:$0xff]
      %s2305 = scalar_lea.vmem [#allocation2], 160
      %v2306 = vld [vmem:[%s2305] ss:$2 sm:$0xff]
      %s2307 = scalar_lea.vmem [#allocation2], 176
      %v2308 = vld [vmem:[%s2307] ss:$2 sm:$0xff]
      %s2309 = scalar_lea.vmem [#allocation2], 192
      %v2310 = vld [vmem:[%s2309] ss:$2 sm:$0xff]
      %s2311 = scalar_lea.vmem [#allocation2], 208
      %v2312 = vld [vmem:[%s2311] ss:$2 sm:$0xff]
      %s2313 = scalar_lea.vmem [#allocation2], 224
      %v2314 = vld [vmem:[%s2313] ss:$2 sm:$0xff]
      %s2315 = scalar_lea.vmem [#allocation2], 240
      %v2316 = vld [vmem:[%s2315] ss:$2 sm:$0xff]
      %s2317 = scalar_lea.vmem [#allocation2], 1
      %v2318 = vld [vmem:[%s2317] ss:$2 sm:$0xff]
      %s2319 = scalar_lea.vmem [#allocation2], 17
      %v2320 = vld [vmem:[%s2319] ss:$2 sm:$0xff]
      %s2321 = scalar_lea.vmem [#allocation2], 33
      %v2322 = vld [vmem:[%s2321] ss:$2 sm:$0xff]
      %s2323 = scalar_lea.vmem [#allocation2], 49
      %v2324 = vld [vmem:[%s2323] ss:$2 sm:$0xff]
      %s2325 = scalar_lea.vmem [#allocation2], 65
      %v2326 = vld [vmem:[%s2325] ss:$2 sm:$0xff]
      %s2327 = scalar_lea.vmem [#allocation2], 81
      %v2328 = vld [vmem:[%s2327] ss:$2 sm:$0xff]
      %s2329 = scalar_lea.vmem [#allocation2], 97
      %v2330 = vld [vmem:[%s2329] ss:$2 sm:$0xff]
      %s2331 = scalar_lea.vmem [#allocation2], 113
      %v2332 = vld [vmem:[%s2331] ss:$2 sm:$0xff]
      %s2333 = scalar_lea.vmem [#allocation2], 129
      %v2334 = vld [vmem:[%s2333] ss:$2 sm:$0xff]
      %s2335 = scalar_lea.vmem [#allocation2], 145
      %v2336 = vld [vmem:[%s2335] ss:$2 sm:$0xff]
      %s2337 = scalar_lea.vmem [#allocation2], 161
      %v2338 = vld [vmem:[%s2337] ss:$2 sm:$0xff]
      %s2339 = scalar_lea.vmem [#allocation2], 177
      %v2340 = vld [vmem:[%s2339] ss:$2 sm:$0xff]
      %s2341 = scalar_lea.vmem [#allocation2], 193
      %v2342 = vld [vmem:[%s2341] ss:$2 sm:$0xff]
      %s2343 = scalar_lea.vmem [#allocation2], 209
      %v2344 = vld [vmem:[%s2343] ss:$2 sm:$0xff]
      %s2345 = scalar_lea.vmem [#allocation2], 225
      %v2346 = vld [vmem:[%s2345] ss:$2 sm:$0xff]
      %s2347 = scalar_lea.vmem [#allocation2], 241
      %v2348 = vld [vmem:[%s2347] ss:$2 sm:$0xff]
      %v2349 = vmax.f32 %v2286, %v2318
      %v2350 = vmax.f32 %v2288, %v2320
      %v2351 = vmax.f32 %v2290, %v2322
      %v2352 = vmax.f32 %v2292, %v2324
      %v2353 = vmax.f32 %v2294, %v2326
      %v2354 = vmax.f32 %v2296, %v2328
      %v2355 = vmax.f32 %v2298, %v2330
      %v2356 = vmax.f32 %v2300, %v2332
      %v2357 = vmax.f32 %v2302, %v2334
      %v2358 = vmax.f32 %v2304, %v2336
      %v2359 = vmax.f32 %v2306, %v2338
      %v2360 = vmax.f32 %v2308, %v2340
      %v2361 = vmax.f32 %v2310, %v2342
      %v2362 = vmax.f32 %v2312, %v2344
      %v2363 = vmax.f32 %v2314, %v2346
      %v2364 = vmax.f32 %v2316, %v2348
      %2365 = vst [vmem:[#allocation3] sm:$0xff] %v2349
      %2366 = vst [vmem:[#allocation3 + $0x8] sm:$0xff] %v2350
      %2367 = vst [vmem:[#allocation3 + $0x10] sm:$0xff] %v2351
      %2368 = vst [vmem:[#allocation3 + $0x18] sm:$0xff] %v2352
      %2369 = vst [vmem:[#allocation3 + $0x20] sm:$0xff] %v2353
      %2370 = vst [vmem:[#allocation3 + $0x28] sm:$0xff] %v2354
      %2371 = vst [vmem:[#allocation3 + $0x30] sm:$0xff] %v2355
      %2372 = vst [vmem:[#allocation3 + $0x38] sm:$0xff] %v2356
      %2373 = vst [vmem:[#allocation3 + $0x40] sm:$0xff] %v2357
      %2374 = vst [vmem:[#allocation3 + $0x48] sm:$0xff] %v2358
      %2375 = vst [vmem:[#allocation3 + $0x50] sm:$0xff] %v2359
      %2376 = vst [vmem:[#allocation3 + $0x58] sm:$0xff] %v2360
      %2377 = vst [vmem:[#allocation3 + $0x60] sm:$0xff] %v2361
      %2378 = vst [vmem:[#allocation3 + $0x68] sm:$0xff] %v2362
      %2379 = vst [vmem:[#allocation3 + $0x70] sm:$0xff] %v2363
      %2380 = vst [vmem:[#allocation3 + $0x78] sm:$0xff] %v2364
      %v2381 = vmin.f32 %v2286, %v2318
      %v2382 = vmin.f32 %v2288, %v2320
      %v2383 = vmin.f32 %v2290, %v2322
      %v2384 = vmin.f32 %v2292, %v2324
      %v2385 = vmin.f32 %v2294, %v2326
      %v2386 = vmin.f32 %v2296, %v2328
      %v2387 = vmin.f32 %v2298, %v2330
      %v2388 = vmin.f32 %v2300, %v2332
      %v2389 = vmin.f32 %v2302, %v2334
      %v2390 = vmin.f32 %v2304, %v2336
      %v2391 = vmin.f32 %v2306, %v2338
      %v2392 = vmin.f32 %v2308, %v2340
      %v2393 = vmin.f32 %v2310, %v2342
      %v2394 = vmin.f32 %v2312, %v2344
      %v2395 = vmin.f32 %v2314, %v2346
      %v2396 = vmin.f32 %v2316, %v2348
      %2397 = vst [vmem:[#allocation4] sm:$0xff] %v2381
      %2398 = vst [vmem:[#allocation4 + $0x8] sm:$0xff] %v2382
      %2399 = vst [vmem:[#allocation4 + $0x10] sm:$0xff] %v2383
      %2400 = vst [vmem:[#allocation4 + $0x18] sm:$0xff] %v2384
      %2401 = vst [vmem:[#allocation4 + $0x20] sm:$0xff] %v2385
      %2402 = vst [vmem:[#allocation4 + $0x28] sm:$0xff] %v2386
      %2403 = vst [vmem:[#allocation4 + $0x30] sm:$0xff] %v2387
      %2404 = vst [vmem:[#allocation4 + $0x38] sm:$0xff] %v2388
      %2405 = vst [vmem:[#allocation4 + $0x40] sm:$0xff] %v2389
      %2406 = vst [vmem:[#allocation4 + $0x48] sm:$0xff] %v2390
      %2407 = vst [vmem:[#allocation4 + $0x50] sm:$0xff] %v2391
      %2408 = vst [vmem:[#allocation4 + $0x58] sm:$0xff] %v2392
      %2409 = vst [vmem:[#allocation4 + $0x60] sm:$0xff] %v2393
      %2410 = vst [vmem:[#allocation4 + $0x68] sm:$0xff] %v2394
      %2411 = vst [vmem:[#allocation4 + $0x70] sm:$0xff] %v2395
      %2412 = vst [vmem:[#allocation4 + $0x78] sm:$0xff] %v2396
      %v2413 = vld [vmem:[#allocation3] sm:$0xff]
      %v2414 = vld [vmem:[#allocation3 + $0x10] sm:$0xff]
      %v2415 = vld [vmem:[#allocation3 + $0x20] sm:$0xff]
      %v2416 = vld [vmem:[#allocation3 + $0x30] sm:$0xff]
      %v2417 = vld [vmem:[#allocation3 + $0x40] sm:$0xff]
      %v2418 = vld [vmem:[#allocation3 + $0x50] sm:$0xff]
      %v2419 = vld [vmem:[#allocation3 + $0x60] sm:$0xff]
      %v2420 = vld [vmem:[#allocation3 + $0x70] sm:$0xff]
      %s2421 = scalar_lea.vmem [#allocation3], 8
      %v2422 = vld [vmem:[%s2421] sm:$0xff]
      %v2423 = vld [vmem:[%s2421 + $0x10] sm:$0xff]
      %v2424 = vld [vmem:[%s2421 + $0x20] sm:$0xff]
      %v2425 = vld [vmem:[%s2421 + $0x30] sm:$0xff]
      %v2426 = vld [vmem:[%s2421 + $0x40] sm:$0xff]
      %v2427 = vld [vmem:[%s2421 + $0x50] sm:$0xff]
      %v2428 = vld [vmem:[%s2421 + $0x60] sm:$0xff]
      %v2429 = vld [vmem:[%s2421 + $0x70] sm:$0xff]
      %v2430 = vmax.f32 %v2413, %v2422
      %v2431 = vmax.f32 %v2414, %v2423
      %v2432 = vmax.f32 %v2415, %v2424
      %v2433 = vmax.f32 %v2416, %v2425
      %v2434 = vmax.f32 %v2417, %v2426
      %v2435 = vmax.f32 %v2418, %v2427
      %v2436 = vmax.f32 %v2419, %v2428
      %v2437 = vmax.f32 %v2420, %v2429
      %v2438 = vld [vmem:[#allocation4] sm:$0xff]
      %v2439 = vld [vmem:[#allocation4 + $0x10] sm:$0xff]
      %v2440 = vld [vmem:[#allocation4 + $0x20] sm:$0xff]
      %v2441 = vld [vmem:[#allocation4 + $0x30] sm:$0xff]
      %v2442 = vld [vmem:[#allocation4 + $0x40] sm:$0xff]
      %v2443 = vld [vmem:[#allocation4 + $0x50] sm:$0xff]
      %v2444 = vld [vmem:[#allocation4 + $0x60] sm:$0xff]
      %v2445 = vld [vmem:[#allocation4 + $0x70] sm:$0xff]
      %s2446 = scalar_lea.vmem [#allocation4], 8
      %v2447 = vld [vmem:[%s2446] sm:$0xff]
      %v2448 = vld [vmem:[%s2446 + $0x10] sm:$0xff]
      %v2449 = vld [vmem:[%s2446 + $0x20] sm:$0xff]
      %v2450 = vld [vmem:[%s2446 + $0x30] sm:$0xff]
      %v2451 = vld [vmem:[%s2446 + $0x40] sm:$0xff]
      %v2452 = vld [vmem:[%s2446 + $0x50] sm:$0xff]
      %v2453 = vld [vmem:[%s2446 + $0x60] sm:$0xff]
      %v2454 = vld [vmem:[%s2446 + $0x70] sm:$0xff]
      %v2455 = vmin.f32 %v2438, %v2447
      %v2456 = vmin.f32 %v2439, %v2448
      %v2457 = vmin.f32 %v2440, %v2449
      %v2458 = vmin.f32 %v2441, %v2450
      %v2459 = vmin.f32 %v2442, %v2451
      %v2460 = vmin.f32 %v2443, %v2452
      %v2461 = vmin.f32 %v2444, %v2453
      %v2462 = vmin.f32 %v2445, %v2454
      %2463 = vxpose.xlu0.b32.start [1/16] %v2430, 128
      %2464 = vxpose.xlu0.b32.cont [2/16] %v2431, 128
      %2465 = vxpose.xlu0.b32.cont [3/16] %v2432, 128
      %2466 = vxpose.xlu0.b32.cont [4/16] %v2433, 128
      %2467 = vxpose.xlu0.b32.cont [5/16] %v2434, 128
      %2468 = vxpose.xlu0.b32.cont [6/16] %v2435, 128
      %2469 = vxpose.xlu0.b32.cont [7/16] %v2436, 128
      %2470 = vxpose.xlu0.b32.cont [8/16] %v2437, 128
      %2471 = vxpose.xlu0.b32.cont [9/16] 0.0, 128
      %2472 = vxpose.xlu0.b32.cont [10/16] 0.0, 128
      %2473 = vxpose.xlu0.b32.cont [11/16] 0.0, 128
      %2474 = vxpose.xlu0.b32.cont [12/16] 0.0, 128
      %2475 = vxpose.xlu0.b32.cont [13/16] 0.0, 128
      %2476 = vxpose.xlu0.b32.cont [14/16] 0.0, 128
      %2477 = vxpose.xlu0.b32.cont [15/16] 0.0, 128
      %2478 = vxpose.xlu0.b32.end [16/16] 0.0, 128
      %v2479 = vpop.trf.xlu0
      %v2480 = vpop.trf.xlu0
      %v2481 = vpop.trf.xlu0
      %v2482 = vpop.trf.xlu0
      %v2483 = vpop.trf.xlu0
      %v2484 = vpop.trf.xlu0
      %v2485 = vpop.trf.xlu0
      %v2486 = vpop.trf.xlu0
      %v2487 = vpop.trf.xlu0
      %v2488 = vpop.trf.xlu0
      %v2489 = vpop.trf.xlu0
      %v2490 = vpop.trf.xlu0
      %v2491 = vpop.trf.xlu0
      %v2492 = vpop.trf.xlu0
      %v2493 = vpop.trf.xlu0
      %v2494 = vpop.trf.xlu0
      %vm2495 = vcmask 523264
      %2496 = vst.msk [vmem:[%s266] sm:$0xff] %vm2495, %v2479
      %2497 = vxpose.xlu0.b32.start [1/16] %v2455, 128
      %2498 = vxpose.xlu0.b32.cont [2/16] %v2456, 128
      %2499 = vxpose.xlu0.b32.cont [3/16] %v2457, 128
      %2500 = vxpose.xlu0.b32.cont [4/16] %v2458, 128
      %2501 = vxpose.xlu0.b32.cont [5/16] %v2459, 128
      %2502 = vxpose.xlu0.b32.cont [6/16] %v2460, 128
      %2503 = vxpose.xlu0.b32.cont [7/16] %v2461, 128
      %2504 = vxpose.xlu0.b32.cont [8/16] %v2462, 128
      %2505 = vxpose.xlu0.b32.cont [9/16] 0.0, 128
      %2506 = vxpose.xlu0.b32.cont [10/16] 0.0, 128
      %2507 = vxpose.xlu0.b32.cont [11/16] 0.0, 128
      %2508 = vxpose.xlu0.b32.cont [12/16] 0.0, 128
      %2509 = vxpose.xlu0.b32.cont [13/16] 0.0, 128
      %2510 = vxpose.xlu0.b32.cont [14/16] 0.0, 128
      %2511 = vxpose.xlu0.b32.cont [15/16] 0.0, 128
      %2512 = vxpose.xlu0.b32.end [16/16] 0.0, 128
      %v2513 = vpop.trf.xlu0
      %v2514 = vpop.trf.xlu0
      %v2515 = vpop.trf.xlu0
      %v2516 = vpop.trf.xlu0
      %v2517 = vpop.trf.xlu0
      %v2518 = vpop.trf.xlu0
      %v2519 = vpop.trf.xlu0
      %v2520 = vpop.trf.xlu0
      %v2521 = vpop.trf.xlu0
      %v2522 = vpop.trf.xlu0
      %v2523 = vpop.trf.xlu0
      %v2524 = vpop.trf.xlu0
      %v2525 = vpop.trf.xlu0
      %v2526 = vpop.trf.xlu0
      %v2527 = vpop.trf.xlu0
      %v2528 = vpop.trf.xlu0
      %2529 = vst.msk [vmem:[%s270] sm:$0xff] %vm2495, %v2513
      %p2530 = scmp.lt.s32.totalorder %s18, 1
      %s2531 = scalar_select %p2530, %s18, 1
      %s2532 = smul.addr %s2531, 8
      %s2533 = scalar_lea.vmem %s3, %s2532
      %p2534 = scmp.lt.s32.totalorder %s18, 1
      %s2535 = scalar_select %p2534, %s18, 1
      %s2536 = smul.addr %s2535, 8
      %s2537 = scalar_lea.vmem %s4, %s2536
      %p2538 = scmp.lt.s32.totalorder %s18, 1
      %s2539 = scalar_select %p2538, %s18, 1
      %s2540 = scalar_lea.vmem %s5, %s2539
      %p2541 = scmp.lt.s32.totalorder %s18, 1
      %s2542 = scalar_select %p2541, %s18, 1
      %s2543 = scalar_lea.vmem %s6, %s2542
      // Predicated region
      $region33: #{conv_block_forward.2} parent=31 // pred_check
        %p2544 = pneg %p104
      $region34: #{conv_block_forward.2} parent=31 // pred_check_branch
        %2546 = sbr.rel (%p2544) target = $region36
      $region35: #{conv_block_forward.2} parent=31 // pred_region
        _
      $region36: #{conv_block_forward.2} parent=31 // pred_fallthru
        _
      // Predicated region
      $region37: #{conv_block_forward.2} parent=31 // pred_check
        %p2547 = pneg %p130
      $region38: #{conv_block_forward.2} parent=31 // pred_check_branch
        %2549 = sbr.rel (%p2547) target = $region40
      $region39: #{conv_block_forward.2} parent=31 // pred_region
        _
      $region40: #{conv_block_forward.2} parent=31 // pred_fallthru
        _
      // Predicated region
      $region41: #{conv_block_forward.2} parent=31 // pred_check
        %p2550 = pneg %p156
      $region42: #{conv_block_forward.2} parent=31 // pred_check_branch
        %2552 = sbr.rel (%p2550) target = $region44
      $region43: #{conv_block_forward.2} parent=31 // pred_region
        _
      $region44: #{conv_block_forward.2} parent=31 // pred_fallthru
        _
      // Predicated region
      $region45: #{conv_block_forward.2} parent=31 // pred_check
        %p2553 = pneg %p182
      $region46: #{conv_block_forward.2} parent=31 // pred_check_branch
        %2555 = sbr.rel (%p2553) target = $region48
      $region47: #{conv_block_forward.2} parent=31 // pred_region
        _
      $region48: #{conv_block_forward.2} parent=31 // pred_fallthru
        _
    $region32: #{conv_block_forward.2} parent=5 // pred_fallthru
      _
    %p2556 = scmp.le.s32.totalorder 2, %s13
    // Predicated region
    $region49: #{conv_block_forward.2} parent=5 // pred_check
      %p2557 = pneg %p2556
    $region50: #{conv_block_forward.2} parent=5 // pred_check_branch
      %2559 = sbr.rel (%p2557) target = $region52
    $region51: #{conv_block_forward.2} parent=5 // pred_region
      %s2560 = ssub.s32 %s13, 2
      // Predicated region
      $region53: #{conv_block_forward.2} parent=51 // pred_check
        %p2561 = pneg %p110
      $region54: #{conv_block_forward.2} parent=51 // pred_check_branch
        %2563 = sbr.rel (%p2561) target = $region56
      $region55: #{conv_block_forward.2} parent=51 // pred_region
        %p2564 = scmp.lt.s32.totalorder %s19, 1
        %s2565 = scalar_select %p2564, %s19, 1
        %s2566 = smul.addr %s2565, 8
        %s2567 = scalar_lea.vmem %s3, %s2566
      $region56: #{conv_block_forward.2} parent=51 // pred_fallthru
        _
      // Predicated region
      $region57: #{conv_block_forward.2} parent=51 // pred_check
        %p2568 = pneg %p136
      $region58: #{conv_block_forward.2} parent=51 // pred_check_branch
        %2570 = sbr.rel (%p2568) target = $region60
      $region59: #{conv_block_forward.2} parent=51 // pred_region
        %p2571 = scmp.lt.s32.totalorder %s19, 1
        %s2572 = scalar_select %p2571, %s19, 1
        %s2573 = smul.addr %s2572, 8
        %s2574 = scalar_lea.vmem %s4, %s2573
      $region60: #{conv_block_forward.2} parent=51 // pred_fallthru
        _
      // Predicated region
      $region61: #{conv_block_forward.2} parent=51 // pred_check
        %p2575 = pneg %p162
      $region62: #{conv_block_forward.2} parent=51 // pred_check_branch
        %2577 = sbr.rel (%p2575) target = $region64
      $region63: #{conv_block_forward.2} parent=51 // pred_region
        %p2578 = scmp.lt.s32.totalorder %s19, 1
        %s2579 = scalar_select %p2578, %s19, 1
        %s2580 = scalar_lea.vmem %s5, %s2579
      $region64: #{conv_block_forward.2} parent=51 // pred_fallthru
        _
      // Predicated region
      $region65: #{conv_block_forward.2} parent=51 // pred_check
        %p2581 = pneg %p188
      $region66: #{conv_block_forward.2} parent=51 // pred_check_branch
        %2583 = sbr.rel (%p2581) target = $region68
      $region67: #{conv_block_forward.2} parent=51 // pred_region
        %p2584 = scmp.lt.s32.totalorder %s19, 1
        %s2585 = scalar_select %p2584, %s19, 1
        %s2586 = scalar_lea.vmem %s6, %s2585
      $region68: #{conv_block_forward.2} parent=51 // pred_fallthru
        _
    $region52: #{conv_block_forward.2} parent=5 // pred_fallthru
      _
  $region6: #{conv_block_forward.2} parent=0 // loop_footer
    %s17 = sadd.s32 1, %s13
  $region7: #{conv_block_forward.2} parent=0 // loop_footer_branch
    %12 = sbr.rel target = $region3
  $region8: #{conv_block_forward.2} parent=0 // loop_exit
    _

</llo_original>
